<compile_context>
chip_gen: v6e
topology: v6e:2x2x1
jax: 0.10.0
libtpu: 0.0.40
codegen_flags: <defaults>
</compile_context>

<pallas_src>
import numpy as np

import jax
import jax.numpy as jnp
from jax import lax
from jax.experimental import pallas as pl
from jax.experimental.pallas import tpu as pltpu


# --------------------------- parameter packing (host) -------------------------


def _conv_toeplitz(w_oihw, w_in):
    """PyTorch (Cout,Cin,5,5) conv weight -> (5*w_in*Cin, 2*w_out*Cout) matrix.

    Row index  = di*(w_in*Cin) + w*Cin + c       (a 5-row input band, lanes = w*Cin+c)
    Col index  = q*(w_out*Cout) + j*Cout + co    (q = 2x2-pool column phase)
    Entry      = W[co, c, di, w - (2j+q)]  if 0 <= w-(2j+q) < 5 else 0
    so one matmul of a 5-row band against this matrix yields both pool-column
    phases of one pre-pool output row at once.
    """
    cout, cin, kh, kw = w_oihw.shape
    w_out = (w_in - kw + 1) // 2
    wt = np.transpose(np.asarray(w_oihw, np.float32), (2, 3, 1, 0))  # (kh,kw,cin,cout)
    mat = np.zeros((kh * w_in * cin, 2 * w_out * cout), np.float32)
    for di in range(kh):
        for dj in range(kw):
            for q in range(2):
                for j in range(w_out):
                    w = 2 * j + q + dj
                    if w >= w_in:
                        continue
                    r0 = di * w_in * cin + w * cin
                    c0 = q * w_out * cout + j * cout
                    mat[r0:r0 + cin, c0:c0 + cout] = wt[di, dj]
    return mat


def _tile_bias(b, w_out):
    # lane index j*Cout + co  ->  bias[co]
    return np.tile(np.asarray(b, np.float32), w_out).reshape(1, -1)


def prepare_params(params):
    """One-time packing of PyTorch-layout params into kernel operands."""
    c1w = _conv_toeplitz(params["conv1_w"], 32)     # (480, 168)
    c2w = _conv_toeplitz(params["conv2_w"], 14)     # (420, 160)

    # torch.flatten(x, 1) flattens NCHW; the kernel's activation is NHWC-flat.
    # Fold the permutation into fc1's rows once here.
    r = np.arange(16 * 5 * 5)
    h_idx, w_idx, c_idx = r // 80, (r // 16) % 5, r % 16
    f1w = np.asarray(params["fc1_w"], np.float32)[c_idx * 25 + h_idx * 5 + w_idx, :]

    f3w = np.zeros((84, 128), np.float32)           # pad N: 10 -> 128 (lane-dense)
    f3w[:, :10] = np.asarray(params["fc3_w"], np.float32)
    f3b = np.zeros((1, 128), np.float32)
    f3b[0, :10] = np.asarray(params["fc3_b"], np.float32)

    bf16 = lambda a: jnp.asarray(a, jnp.bfloat16)
    f32 = lambda a: jnp.asarray(a, jnp.float32)
    return {
        "c1w": bf16(c1w), "c1b": f32(_tile_bias(params["conv1_b"], 14)),   # (1,84)
        "c2w": bf16(c2w), "c2b": f32(_tile_bias(params["conv2_b"], 5)),    # (1,80)
        "f1w": bf16(f1w), "f1b": f32(np.asarray(params["fc1_b"]).reshape(1, -1)),
        "f2w": bf16(np.asarray(params["fc2_w"])),
        "f2b": f32(np.asarray(params["fc2_b"]).reshape(1, -1)),
        "f3w": bf16(f3w), "f3b": f32(f3b),
    }


# ---------------------------------- kernel ------------------------------------


def _make_net_kernel(nb):
    """Fused conv1+pool -> conv2+pool -> fc1 -> fc2 -> fc3 for `nb` images."""

    def kernel(x_ref, c1w, c1b, c2w, c2b, f1w, f1b, f2w, f2b, f3w, f3b, o_ref,
               xb1_scr, xb2_scr, hflat_scr):
        for img in range(nb):
            # ---- conv1 patch bands, gathered straight from the raw input block.
            # x_ref[img, m, a, w*3+c] = image row 4*a+m.  Pooled output row
            # ip = 2t+s (s = parity) with pool-row phase pp reads input rows
            # 4t + (2s+pp+di): a contiguous 7-row slice of parity plane m.
            for g, (s, pp) in enumerate(((0, 0), (0, 1), (1, 0), (1, 1))):
                for di in range(5):
                    base = 2 * s + pp + di                       # 0..7
                    xb1_scr[g * 7:g * 7 + 7, di * 96:di * 96 + 96] = (
                        x_ref[img, base % 4, base // 4:base // 4 + 7, :])
            y = jnp.dot(xb1_scr[...].astype(jnp.bfloat16), c1w[...],
                        preferred_element_type=jnp.float32)      # (28, 168)
            ye = jnp.maximum(y[0:7, :], y[7:14, :])      # even pooled rows (max over pp)
            yo = jnp.maximum(y[14:21, :], y[21:28, :])   # odd pooled rows
            b1 = c1b[...]
            h1e = jnp.maximum(jnp.maximum(ye[:, 0:84], ye[:, 84:168]) + b1, 0.0)
            h1o = jnp.maximum(jnp.maximum(yo[:, 0:84], yo[:, 84:168]) + b1, 0.0)

            # ---- conv2 patch bands from the (on-chip) parity-split conv1 output.
            # Needed conv1 rows 2*i2 + (p2+di) are a contiguous slice of
            # h1e (r even) / h1o (r odd).
            for p2 in (0, 1):
                for di in range(5):
                    r = p2 + di
                    src = h1e if r % 2 == 0 else h1o
                    u = r // 2
                    xb2_scr[p2 * 5:p2 * 5 + 5, di * 84:di * 84 + 84] = src[u:u + 5, :]
            y2 = jnp.dot(xb2_scr[...].astype(jnp.bfloat16), c2w[...],
                         preferred_element_type=jnp.float32)     # (10, 160)
            m2 = jnp.maximum(y2[0:5, :], y2[5:10, :])
            h2 = jnp.maximum(jnp.maximum(m2[:, 0:80], m2[:, 80:160]) + c2b[...],
                             0.0)                                # (5, 80) = (i2, j2*16+co)

            # ---- NHWC flatten of the (5,5,16) activation (stays in VMEM).
            for r in range(5):
                hflat_scr[img:img + 1, r * 80:r * 80 + 80] = h2[r:r + 1, :]

        # ---- fc1 -> ReLU -> fc2 -> ReLU -> fc3, batched over the nb images.
        h = jnp.dot(hflat_scr[...].astype(jnp.bfloat16), f1w[...],
                    preferred_element_type=jnp.float32)
        h = jnp.maximum(h + f1b[...], 0.0)
        h = jnp.dot(h.astype(jnp.bfloat16), f2w[...],
                    preferred_element_type=jnp.float32)
        h = jnp.maximum(h + f2b[...], 0.0)
        h = jnp.dot(h.astype(jnp.bfloat16), f3w[...],
                    preferred_element_type=jnp.float32)
        o_ref[:, 0, :] = (h + f3b[...]).astype(o_ref.dtype)

    return kernel


# --------------------------------- wrapper -------------------------------------


def _pick_images_per_step(bsz):
    # Largest block that still leaves >=2 grid steps (keeps both v7x TCs busy).
    for cand in (8, 4, 2):
        if bsz % cand == 0 and bsz // cand >= 2:
            return cand
    return 1


def _const_spec(shape):
    zeros = (0,) * len(shape)
    return pl.BlockSpec(shape, lambda i, _z=zeros: _z)


def net_forward(x_nchw, p):
    bsz = x_nchw.shape[0]
    nb = _pick_images_per_step(bsz)

    # Raw-input relayout only (no im2col in HBM): NCHW -> NHWC -> split rows by
    # (row mod 4) so every in-kernel gather is a contiguous static slice.
    # x4[b, m, a, w*3+c] = x[b, c, 4*a+m, w]
    x = jnp.transpose(x_nchw, (0, 2, 3, 1)).reshape(bsz, 8, 4, 96)
    x4 = jnp.transpose(x, (0, 2, 1, 3)).astype(jnp.float32)      # (B, 4, 8, 96)

    w_args = [p["c1w"], p["c1b"], p["c2w"], p["c2b"],
              p["f1w"], p["f1b"], p["f2w"], p["f2b"], p["f3w"], p["f3b"]]

    out = pl.pallas_call(
        _make_net_kernel(nb),
        out_shape=jax.ShapeDtypeStruct((bsz, 1, 128), jnp.float32),
        grid=(bsz // nb,),
        in_specs=[pl.BlockSpec((nb, 4, 8, 96), lambda i: (i, 0, 0, 0))]
                 + [_const_spec(a.shape) for a in w_args],
        out_specs=pl.BlockSpec((nb, 1, 128), lambda i: (i, 0, 0)),
        scratch_shapes=[
            pltpu.VMEM((28, 480), jnp.float32),    # conv1 patch band
            pltpu.VMEM((10, 420), jnp.float32),    # conv2 patch band
            pltpu.VMEM((nb, 400), jnp.float32),    # flattened activations
        ],
        compiler_params=pltpu.CompilerParams(
            dimension_semantics=("parallel",),
            vmem_limit_bytes=32 * 1024 * 1024),
    )(x4, *w_args)
    return out[:, 0, :10]


# ------------------------------ params / reference ----------------------------


def init_params(key):
    keys = jax.random.split(key, 10)

    def u(k, shape, fan_in):
        bound = 1.0 / jnp.sqrt(jnp.float32(fan_in))
        return jax.random.uniform(k, shape, jnp.float32, -bound, bound)

    # conv weights in PyTorch OIHW layout; fc weights stored as (in, out).
    return {
        "conv1_w": u(keys[0], (6, 3, 5, 5), 3 * 25),
        "conv1_b": u(keys[1], (6,), 3 * 25),
        "conv2_w": u(keys[2], (16, 6, 5, 5), 6 * 25),
        "conv2_b": u(keys[3], (16,), 6 * 25),
        "fc1_w": u(keys[4], (16 * 5 * 5, 120), 16 * 5 * 5),
        "fc1_b": u(keys[5], (120,), 16 * 5 * 5),
        "fc2_w": u(keys[6], (120, 84), 120),
        "fc2_b": u(keys[7], (84,), 120),
        "fc3_w": u(keys[8], (84, 10), 84),
        "fc3_b": u(keys[9], (10,), 84),
    }


def reference_forward(x_nchw, params, emulate_bf16=False):
    """PyTorch-semantics reference; emulate_bf16 applies the kernel's roundings."""
    rd = (lambda a: a.astype(jnp.bfloat16).astype(jnp.float32)) if emulate_bf16 \
        else (lambda a: a)
    hi = lax.Precision.HIGHEST

    def conv(x, w, b):
        y = lax.conv_general_dilated(
            rd(x), rd(w), (1, 1), "VALID",
            dimension_numbers=("NCHW", "OIHW", "NCHW"), precision=hi)
        return jnp.maximum(y + b[None, :, None, None], 0.0)

    def pool(x):
        return lax.reduce_window(x, -jnp.inf, lax.max,
                                 (1, 1, 2, 2), (1, 1, 2, 2), "VALID")

    y = pool(conv(x_nchw, params["conv1_w"], params["conv1_b"]))
    y = pool(conv(y, params["conv2_w"], params["conv2_b"]))
    y = y.reshape(y.shape[0], -1)
    y = jnp.maximum(jnp.dot(rd(y), rd(params["fc1_w"]), precision=hi)
                    + params["fc1_b"], 0.0)
    y = jnp.maximum(jnp.dot(rd(y), rd(params["fc2_w"]), precision=hi)
                    + params["fc2_b"], 0.0)
    return jnp.dot(rd(y), rd(params["fc3_w"]), precision=hi) + params["fc3_b"]


if __name__ == "__main__":
    key = jax.random.PRNGKey(0)
    pkey, xkey = jax.random.split(key)
    params = init_params(pkey)
    packed = prepare_params(params)

    # 16*5*5 flatten implies 32x32 input: batch=2, 3x32x32.
    x = jax.random.normal(xkey, (2, 3, 32, 32), jnp.float32)

    fwd = jax.jit(net_forward)
    out = jax.block_until_ready(fwd(x, packed))
    assert out.shape == (2, 10), out.shape

    # Tight check vs a reference that applies the same bf16 roundings.
    ref_bf16 = jax.block_until_ready(
        reference_forward(x, params, emulate_bf16=True))
    assert jnp.allclose(out, ref_bf16, atol=5e-3, rtol=5e-3), (
        float(jnp.max(jnp.abs(out - ref_bf16))))

    # Loose sanity check vs the pure-f32 reference (bf16 matmul operands).
    ref_f32 = jax.block_until_ready(reference_forward(x, params))
    assert jnp.allclose(out, ref_f32, atol=5e-2, rtol=5e-2), (
        float(jnp.max(jnp.abs(out - ref_f32))))

    print("KERNEL_OK")
</pallas_src>

<mosaic_0001>
module attributes {stable_mosaic.version = 11 : i64} {
  func.func @kernel(%arg0: i32, %arg1: memref<1x4x8x96xf32, #tpu.memory_space<vmem>>, %arg2: memref<480x168xbf16, #tpu.memory_space<vmem>>, %arg3: memref<1x84xf32, #tpu.memory_space<vmem>>, %arg4: memref<420x160xbf16, #tpu.memory_space<vmem>>, %arg5: memref<1x80xf32, #tpu.memory_space<vmem>>, %arg6: memref<400x120xbf16, #tpu.memory_space<vmem>>, %arg7: memref<1x120xf32, #tpu.memory_space<vmem>>, %arg8: memref<120x84xbf16, #tpu.memory_space<vmem>>, %arg9: memref<1x84xf32, #tpu.memory_space<vmem>>, %arg10: memref<84x128xbf16, #tpu.memory_space<vmem>>, %arg11: memref<1x128xf32, #tpu.memory_space<vmem>>, %arg12: memref<1x1x128xf32, #tpu.memory_space<vmem>>, %arg13: memref<28x480xf32, #tpu.memory_space<vmem>>, %arg14: memref<10x420xf32, #tpu.memory_space<vmem>>, %arg15: memref<1x400xf32, #tpu.memory_space<vmem>>) attributes {dimension_semantics = [#tpu.dimension_semantics<parallel>], iteration_bounds = array<i64: 2>, scalar_prefetch = 0 : i64, scratch_operands = 3 : i64, tpu.core_type = #tpu.core_type<tc>, window_params = [{transform_indices = @transform_0, window_bounds = array<i64: 1, 4, 8, 96>}, {pipeline_mode = #tpu.pipeline_mode<synchronous>, transform_indices = @transform_1, window_bounds = array<i64: 480, 168>}, {pipeline_mode = #tpu.pipeline_mode<synchronous>, transform_indices = @transform_2, window_bounds = array<i64: 1, 84>}, {pipeline_mode = #tpu.pipeline_mode<synchronous>, transform_indices = @transform_3, window_bounds = array<i64: 420, 160>}, {pipeline_mode = #tpu.pipeline_mode<synchronous>, transform_indices = @transform_4, window_bounds = array<i64: 1, 80>}, {pipeline_mode = #tpu.pipeline_mode<synchronous>, transform_indices = @transform_5, window_bounds = array<i64: 400, 120>}, {pipeline_mode = #tpu.pipeline_mode<synchronous>, transform_indices = @transform_6, window_bounds = array<i64: 1, 120>}, {pipeline_mode = #tpu.pipeline_mode<synchronous>, transform_indices = @transform_7, window_bounds = array<i64: 120, 84>}, {pipeline_mode = #tpu.pipeline_mode<synchronous>, transform_indices = @transform_8, window_bounds = array<i64: 1, 84>}, {pipeline_mode = #tpu.pipeline_mode<synchronous>, transform_indices = @transform_9, window_bounds = array<i64: 84, 128>}, {pipeline_mode = #tpu.pipeline_mode<synchronous>, transform_indices = @transform_10, window_bounds = array<i64: 1, 128>}, {transform_indices = @transform_11, window_bounds = array<i64: 1, 1, 128>}]} {
    %c0 = arith.constant 0 : index
    %c0_0 = arith.constant 0 : index
    %c0_1 = arith.constant 0 : index
    %c0_2 = arith.constant 0 : index
    %0 = vector.load %arg1[%c0, %c0_0, %c0_1, %c0_2] : memref<1x4x8x96xf32, #tpu.memory_space<vmem>>, vector<1x1x7x96xf32>
    %1 = vector.shape_cast %0 : vector<1x1x7x96xf32> to vector<7x96xf32>
    %c0_3 = arith.constant 0 : index
    %c0_4 = arith.constant 0 : index
    %2 = vector.load %arg13[%c0_3, %c0_4] : memref<28x480xf32, #tpu.memory_space<vmem>>, vector<7x96xf32>
    tpu.vector_store %arg13[%c0_3, %c0_4], %1 {strides = array<i32>} : memref<28x480xf32, #tpu.memory_space<vmem>>, vector<7x96xf32>,
    %c0_5 = arith.constant 0 : index
    %c1 = arith.constant 1 : index
    %c0_6 = arith.constant 0 : index
    %c0_7 = arith.constant 0 : index
    %3 = vector.load %arg1[%c0_5, %c1, %c0_6, %c0_7] : memref<1x4x8x96xf32, #tpu.memory_space<vmem>>, vector<1x1x7x96xf32>
    %4 = vector.shape_cast %3 : vector<1x1x7x96xf32> to vector<7x96xf32>
    %c0_8 = arith.constant 0 : index
    %c96 = arith.constant 96 : index
    %5 = vector.load %arg13[%c0_8, %c96] : memref<28x480xf32, #tpu.memory_space<vmem>>, vector<7x96xf32>
    tpu.vector_store %arg13[%c0_8, %c96], %4 {strides = array<i32>} : memref<28x480xf32, #tpu.memory_space<vmem>>, vector<7x96xf32>,
    %c0_9 = arith.constant 0 : index
    %c2 = arith.constant 2 : index
    %c0_10 = arith.constant 0 : index
    %c0_11 = arith.constant 0 : index
    %6 = vector.load %arg1[%c0_9, %c2, %c0_10, %c0_11] : memref<1x4x8x96xf32, #tpu.memory_space<vmem>>, vector<1x1x7x96xf32>
    %7 = vector.shape_cast %6 : vector<1x1x7x96xf32> to vector<7x96xf32>
    %c0_12 = arith.constant 0 : index
    %c192 = arith.constant 192 : index
    %8 = vector.load %arg13[%c0_12, %c192] : memref<28x480xf32, #tpu.memory_space<vmem>>, vector<7x96xf32>
    tpu.vector_store %arg13[%c0_12, %c192], %7 {strides = array<i32>} : memref<28x480xf32, #tpu.memory_space<vmem>>, vector<7x96xf32>,
    %c0_13 = arith.constant 0 : index
    %c3 = arith.constant 3 : index
    %c0_14 = arith.constant 0 : index
    %c0_15 = arith.constant 0 : index
    %9 = vector.load %arg1[%c0_13, %c3, %c0_14, %c0_15] : memref<1x4x8x96xf32, #tpu.memory_space<vmem>>, vector<1x1x7x96xf32>
    %10 = vector.shape_cast %9 : vector<1x1x7x96xf32> to vector<7x96xf32>
    %c0_16 = arith.constant 0 : index
    %c288 = arith.constant 288 : index
    %11 = vector.load %arg13[%c0_16, %c288] : memref<28x480xf32, #tpu.memory_space<vmem>>, vector<7x96xf32>
    tpu.vector_store %arg13[%c0_16, %c288], %10 {strides = array<i32>} : memref<28x480xf32, #tpu.memory_space<vmem>>, vector<7x96xf32>,
    %c0_17 = arith.constant 0 : index
    %c0_18 = arith.constant 0 : index
    %c1_19 = arith.constant 1 : index
    %c0_20 = arith.constant 0 : index
    %12 = vector.load %arg1[%c0_17, %c0_18, %c1_19, %c0_20] : memref<1x4x8x96xf32, #tpu.memory_space<vmem>>, vector<1x1x7x96xf32>
    %13 = vector.shape_cast %12 : vector<1x1x7x96xf32> to vector<7x96xf32>
    %c0_21 = arith.constant 0 : index
    %c384 = arith.constant 384 : index
    %14 = vector.load %arg13[%c0_21, %c384] : memref<28x480xf32, #tpu.memory_space<vmem>>, vector<7x96xf32>
    tpu.vector_store %arg13[%c0_21, %c384], %13 {strides = array<i32>} : memref<28x480xf32, #tpu.memory_space<vmem>>, vector<7x96xf32>,
    %c0_22 = arith.constant 0 : index
    %c1_23 = arith.constant 1 : index
    %c0_24 = arith.constant 0 : index
    %c0_25 = arith.constant 0 : index
    %15 = vector.load %arg1[%c0_22, %c1_23, %c0_24, %c0_25] : memref<1x4x8x96xf32, #tpu.memory_space<vmem>>, vector<1x1x7x96xf32>
    %16 = vector.shape_cast %15 : vector<1x1x7x96xf32> to vector<7x96xf32>
    %c7 = arith.constant 7 : index
    %c0_26 = arith.constant 0 : index
    %17 = vector.load %arg13[%c7, %c0_26] : memref<28x480xf32, #tpu.memory_space<vmem>>, vector<7x96xf32>
    tpu.vector_store %arg13[%c7, %c0_26], %16 {strides = array<i32>} : memref<28x480xf32, #tpu.memory_space<vmem>>, vector<7x96xf32>,
    %c0_27 = arith.constant 0 : index
    %c2_28 = arith.constant 2 : index
    %c0_29 = arith.constant 0 : index
    %c0_30 = arith.constant 0 : index
    %18 = vector.load %arg1[%c0_27, %c2_28, %c0_29, %c0_30] : memref<1x4x8x96xf32, #tpu.memory_space<vmem>>, vector<1x1x7x96xf32>
    %19 = vector.shape_cast %18 : vector<1x1x7x96xf32> to vector<7x96xf32>
    %c7_31 = arith.constant 7 : index
    %c96_32 = arith.constant 96 : index
    %20 = vector.load %arg13[%c7_31, %c96_32] : memref<28x480xf32, #tpu.memory_space<vmem>>, vector<7x96xf32>
    tpu.vector_store %arg13[%c7_31, %c96_32], %19 {strides = array<i32>} : memref<28x480xf32, #tpu.memory_space<vmem>>, vector<7x96xf32>,
    %c0_33 = arith.constant 0 : index
    %c3_34 = arith.constant 3 : index
    %c0_35 = arith.constant 0 : index
    %c0_36 = arith.constant 0 : index
    %21 = vector.load %arg1[%c0_33, %c3_34, %c0_35, %c0_36] : memref<1x4x8x96xf32, #tpu.memory_space<vmem>>, vector<1x1x7x96xf32>
    %22 = vector.shape_cast %21 : vector<1x1x7x96xf32> to vector<7x96xf32>
    %c7_37 = arith.constant 7 : index
    %c192_38 = arith.constant 192 : index
    %23 = vector.load %arg13[%c7_37, %c192_38] : memref<28x480xf32, #tpu.memory_space<vmem>>, vector<7x96xf32>
    tpu.vector_store %arg13[%c7_37, %c192_38], %22 {strides = array<i32>} : memref<28x480xf32, #tpu.memory_space<vmem>>, vector<7x96xf32>,
    %c0_39 = arith.constant 0 : index
    %c0_40 = arith.constant 0 : index
    %c1_41 = arith.constant 1 : index
    %c0_42 = arith.constant 0 : index
    %24 = vector.load %arg1[%c0_39, %c0_40, %c1_41, %c0_42] : memref<1x4x8x96xf32, #tpu.memory_space<vmem>>, vector<1x1x7x96xf32>
    %25 = vector.shape_cast %24 : vector<1x1x7x96xf32> to vector<7x96xf32>
    %c7_43 = arith.constant 7 : index
    %c288_44 = arith.constant 288 : index
    %26 = vector.load %arg13[%c7_43, %c288_44] : memref<28x480xf32, #tpu.memory_space<vmem>>, vector<7x96xf32>
    tpu.vector_store %arg13[%c7_43, %c288_44], %25 {strides = array<i32>} : memref<28x480xf32, #tpu.memory_space<vmem>>, vector<7x96xf32>,
    %c0_45 = arith.constant 0 : index
    %c1_46 = arith.constant 1 : index
    %c1_47 = arith.constant 1 : index
    %c0_48 = arith.constant 0 : index
    %27 = vector.load %arg1[%c0_45, %c1_46, %c1_47, %c0_48] : memref<1x4x8x96xf32, #tpu.memory_space<vmem>>, vector<1x1x7x96xf32>
    %28 = vector.shape_cast %27 : vector<1x1x7x96xf32> to vector<7x96xf32>
    %c7_49 = arith.constant 7 : index
    %c384_50 = arith.constant 384 : index
    %29 = vector.load %arg13[%c7_49, %c384_50] : memref<28x480xf32, #tpu.memory_space<vmem>>, vector<7x96xf32>
    tpu.vector_store %arg13[%c7_49, %c384_50], %28 {strides = array<i32>} : memref<28x480xf32, #tpu.memory_space<vmem>>, vector<7x96xf32>,
    %c0_51 = arith.constant 0 : index
    %c2_52 = arith.constant 2 : index
    %c0_53 = arith.constant 0 : index
    %c0_54 = arith.constant 0 : index
    %30 = vector.load %arg1[%c0_51, %c2_52, %c0_53, %c0_54] : memref<1x4x8x96xf32, #tpu.memory_space<vmem>>, vector<1x1x7x96xf32>
    %31 = vector.shape_cast %30 : vector<1x1x7x96xf32> to vector<7x96xf32>
    %c14 = arith.constant 14 : index
    %c0_55 = arith.constant 0 : index
    %32 = vector.load %arg13[%c14, %c0_55] : memref<28x480xf32, #tpu.memory_space<vmem>>, vector<7x96xf32>
    tpu.vector_store %arg13[%c14, %c0_55], %31 {strides = array<i32>} : memref<28x480xf32, #tpu.memory_space<vmem>>, vector<7x96xf32>,
    %c0_56 = arith.constant 0 : index
    %c3_57 = arith.constant 3 : index
    %c0_58 = arith.constant 0 : index
    %c0_59 = arith.constant 0 : index
    %33 = vector.load %arg1[%c0_56, %c3_57, %c0_58, %c0_59] : memref<1x4x8x96xf32, #tpu.memory_space<vmem>>, vector<1x1x7x96xf32>
    %34 = vector.shape_cast %33 : vector<1x1x7x96xf32> to vector<7x96xf32>
    %c14_60 = arith.constant 14 : index
    %c96_61 = arith.constant 96 : index
    %35 = vector.load %arg13[%c14_60, %c96_61] : memref<28x480xf32, #tpu.memory_space<vmem>>, vector<7x96xf32>
    tpu.vector_store %arg13[%c14_60, %c96_61], %34 {strides = array<i32>} : memref<28x480xf32, #tpu.memory_space<vmem>>, vector<7x96xf32>,
    %c0_62 = arith.constant 0 : index
    %c0_63 = arith.constant 0 : index
    %c1_64 = arith.constant 1 : index
    %c0_65 = arith.constant 0 : index
    %36 = vector.load %arg1[%c0_62, %c0_63, %c1_64, %c0_65] : memref<1x4x8x96xf32, #tpu.memory_space<vmem>>, vector<1x1x7x96xf32>
    %37 = vector.shape_cast %36 : vector<1x1x7x96xf32> to vector<7x96xf32>
    %c14_66 = arith.constant 14 : index
    %c192_67 = arith.constant 192 : index
    %38 = vector.load %arg13[%c14_66, %c192_67] : memref<28x480xf32, #tpu.memory_space<vmem>>, vector<7x96xf32>
    tpu.vector_store %arg13[%c14_66, %c192_67], %37 {strides = array<i32>} : memref<28x480xf32, #tpu.memory_space<vmem>>, vector<7x96xf32>,
    %c0_68 = arith.constant 0 : index
    %c1_69 = arith.constant 1 : index
    %c1_70 = arith.constant 1 : index
    %c0_71 = arith.constant 0 : index
    %39 = vector.load %arg1[%c0_68, %c1_69, %c1_70, %c0_71] : memref<1x4x8x96xf32, #tpu.memory_space<vmem>>, vector<1x1x7x96xf32>
    %40 = vector.shape_cast %39 : vector<1x1x7x96xf32> to vector<7x96xf32>
    %c14_72 = arith.constant 14 : index
    %c288_73 = arith.constant 288 : index
    %41 = vector.load %arg13[%c14_72, %c288_73] : memref<28x480xf32, #tpu.memory_space<vmem>>, vector<7x96xf32>
    tpu.vector_store %arg13[%c14_72, %c288_73], %40 {strides = array<i32>} : memref<28x480xf32, #tpu.memory_space<vmem>>, vector<7x96xf32>,
    %c0_74 = arith.constant 0 : index
    %c2_75 = arith.constant 2 : index
    %c1_76 = arith.constant 1 : index
    %c0_77 = arith.constant 0 : index
    %42 = vector.load %arg1[%c0_74, %c2_75, %c1_76, %c0_77] : memref<1x4x8x96xf32, #tpu.memory_space<vmem>>, vector<1x1x7x96xf32>
    %43 = vector.shape_cast %42 : vector<1x1x7x96xf32> to vector<7x96xf32>
    %c14_78 = arith.constant 14 : index
    %c384_79 = arith.constant 384 : index
    %44 = vector.load %arg13[%c14_78, %c384_79] : memref<28x480xf32, #tpu.memory_space<vmem>>, vector<7x96xf32>
    tpu.vector_store %arg13[%c14_78, %c384_79], %43 {strides = array<i32>} : memref<28x480xf32, #tpu.memory_space<vmem>>, vector<7x96xf32>,
    %c0_80 = arith.constant 0 : index
    %c3_81 = arith.constant 3 : index
    %c0_82 = arith.constant 0 : index
    %c0_83 = arith.constant 0 : index
    %45 = vector.load %arg1[%c0_80, %c3_81, %c0_82, %c0_83] : memref<1x4x8x96xf32, #tpu.memory_space<vmem>>, vector<1x1x7x96xf32>
    %46 = vector.shape_cast %45 : vector<1x1x7x96xf32> to vector<7x96xf32>
    %c21 = arith.constant 21 : index
    %c0_84 = arith.constant 0 : index
    %47 = vector.load %arg13[%c21, %c0_84] : memref<28x480xf32, #tpu.memory_space<vmem>>, vector<7x96xf32>
    tpu.vector_store %arg13[%c21, %c0_84], %46 {strides = array<i32>} : memref<28x480xf32, #tpu.memory_space<vmem>>, vector<7x96xf32>,
    %c0_85 = arith.constant 0 : index
    %c0_86 = arith.constant 0 : index
    %c1_87 = arith.constant 1 : index
    %c0_88 = arith.constant 0 : index
    %48 = vector.load %arg1[%c0_85, %c0_86, %c1_87, %c0_88] : memref<1x4x8x96xf32, #tpu.memory_space<vmem>>, vector<1x1x7x96xf32>
    %49 = vector.shape_cast %48 : vector<1x1x7x96xf32> to vector<7x96xf32>
    %c21_89 = arith.constant 21 : index
    %c96_90 = arith.constant 96 : index
    %50 = vector.load %arg13[%c21_89, %c96_90] : memref<28x480xf32, #tpu.memory_space<vmem>>, vector<7x96xf32>
    tpu.vector_store %arg13[%c21_89, %c96_90], %49 {strides = array<i32>} : memref<28x480xf32, #tpu.memory_space<vmem>>, vector<7x96xf32>,
    %c0_91 = arith.constant 0 : index
    %c1_92 = arith.constant 1 : index
    %c1_93 = arith.constant 1 : index
    %c0_94 = arith.constant 0 : index
    %51 = vector.load %arg1[%c0_91, %c1_92, %c1_93, %c0_94] : memref<1x4x8x96xf32, #tpu.memory_space<vmem>>, vector<1x1x7x96xf32>
    %52 = vector.shape_cast %51 : vector<1x1x7x96xf32> to vector<7x96xf32>
    %c21_95 = arith.constant 21 : index
    %c192_96 = arith.constant 192 : index
    %53 = vector.load %arg13[%c21_95, %c192_96] : memref<28x480xf32, #tpu.memory_space<vmem>>, vector<7x96xf32>
    tpu.vector_store %arg13[%c21_95, %c192_96], %52 {strides = array<i32>} : memref<28x480xf32, #tpu.memory_space<vmem>>, vector<7x96xf32>,
    %c0_97 = arith.constant 0 : index
    %c2_98 = arith.constant 2 : index
    %c1_99 = arith.constant 1 : index
    %c0_100 = arith.constant 0 : index
    %54 = vector.load %arg1[%c0_97, %c2_98, %c1_99, %c0_100] : memref<1x4x8x96xf32, #tpu.memory_space<vmem>>, vector<1x1x7x96xf32>
    %55 = vector.shape_cast %54 : vector<1x1x7x96xf32> to vector<7x96xf32>
    %c21_101 = arith.constant 21 : index
    %c288_102 = arith.constant 288 : index
    %56 = vector.load %arg13[%c21_101, %c288_102] : memref<28x480xf32, #tpu.memory_space<vmem>>, vector<7x96xf32>
    tpu.vector_store %arg13[%c21_101, %c288_102], %55 {strides = array<i32>} : memref<28x480xf32, #tpu.memory_space<vmem>>, vector<7x96xf32>,
    %c0_103 = arith.constant 0 : index
    %c3_104 = arith.constant 3 : index
    %c1_105 = arith.constant 1 : index
    %c0_106 = arith.constant 0 : index
    %57 = vector.load %arg1[%c0_103, %c3_104, %c1_105, %c0_106] : memref<1x4x8x96xf32, #tpu.memory_space<vmem>>, vector<1x1x7x96xf32>
    %58 = vector.shape_cast %57 : vector<1x1x7x96xf32> to vector<7x96xf32>
    %c21_107 = arith.constant 21 : index
    %c384_108 = arith.constant 384 : index
    %59 = vector.load %arg13[%c21_107, %c384_108] : memref<28x480xf32, #tpu.memory_space<vmem>>, vector<7x96xf32>
    tpu.vector_store %arg13[%c21_107, %c384_108], %58 {strides = array<i32>} : memref<28x480xf32, #tpu.memory_space<vmem>>, vector<7x96xf32>,
    %c0_109 = arith.constant 0 : index
    %c0_110 = arith.constant 0 : index
    %60 = vector.load %arg13[%c0_109, %c0_110] : memref<28x480xf32, #tpu.memory_space<vmem>>, vector<28x480xf32>
    %61 = arith.truncf %60 : vector<28x480xf32> to vector<28x480xbf16>
    %c0_111 = arith.constant 0 : index
    %c0_112 = arith.constant 0 : index
    %62 = vector.load %arg2[%c0_111, %c0_112] : memref<480x168xbf16, #tpu.memory_space<vmem>>, vector<480x168xbf16>
    %cst = arith.constant dense<0.000000e+00> : vector<28x168xf32>
    %63 = tpu.matmul %61, %62, %cst {dimension_numbers = #tpu.dot_dimension_numbers<[1], [0], [0], [1], [0, 0, 1, 1], [], []>} : vector<28x480xbf16>, vector<480x168xbf16>, vector<28x168xf32> -> vector<28x168xf32>
    %64 = vector.extract_strided_slice %63 {offsets = [0, 0], sizes = [7, 168], strides = [1, 1]} : vector<28x168xf32> to vector<7x168xf32>
    %65 = vector.extract_strided_slice %63 {offsets = [7, 0], sizes = [7, 168], strides = [1, 1]} : vector<28x168xf32> to vector<7x168xf32>
    %66 = arith.maximumf %64, %65 : vector<7x168xf32>
    %67 = vector.extract_strided_slice %63 {offsets = [14, 0], sizes = [7, 168], strides = [1, 1]} : vector<28x168xf32> to vector<7x168xf32>
    %68 = vector.extract_strided_slice %63 {offsets = [21, 0], sizes = [7, 168], strides = [1, 1]} : vector<28x168xf32> to vector<7x168xf32>
    %69 = arith.maximumf %67, %68 : vector<7x168xf32>
    %c0_113 = arith.constant 0 : index
    %c0_114 = arith.constant 0 : index
    %70 = vector.load %arg3[%c0_113, %c0_114] : memref<1x84xf32, #tpu.memory_space<vmem>>, vector<1x84xf32>
    %71 = vector.extract_strided_slice %66 {offsets = [0, 0], sizes = [7, 84], strides = [1, 1]} : vector<7x168xf32> to vector<7x84xf32>
    %72 = vector.extract_strided_slice %66 {offsets = [0, 84], sizes = [7, 84], strides = [1, 1]} : vector<7x168xf32> to vector<7x84xf32>
    %73 = arith.maximumf %71, %72 : vector<7x84xf32>
    %74 = vector.broadcast %70 : vector<1x84xf32> to vector<7x84xf32>
    %75 = arith.addf %73, %74 : vector<7x84xf32>
    %cst_115 = arith.constant 0.000000e+00 : f32
    %76 = vector.broadcast %cst_115 : f32 to vector<7x84xf32>
    %77 = arith.maximumf %75, %76 : vector<7x84xf32>
    %78 = vector.extract_strided_slice %69 {offsets = [0, 0], sizes = [7, 84], strides = [1, 1]} : vector<7x168xf32> to vector<7x84xf32>
    %79 = vector.extract_strided_slice %69 {offsets = [0, 84], sizes = [7, 84], strides = [1, 1]} : vector<7x168xf32> to vector<7x84xf32>
    %80 = arith.maximumf %78, %79 : vector<7x84xf32>
    %81 = vector.broadcast %70 : vector<1x84xf32> to vector<7x84xf32>
    %82 = arith.addf %80, %81 : vector<7x84xf32>
    %cst_116 = arith.constant 0.000000e+00 : f32
    %83 = vector.broadcast %cst_116 : f32 to vector<7x84xf32>
    %84 = arith.maximumf %82, %83 : vector<7x84xf32>
    %85 = vector.extract_strided_slice %77 {offsets = [0, 0], sizes = [5, 84], strides = [1, 1]} : vector<7x84xf32> to vector<5x84xf32>
    %c0_117 = arith.constant 0 : index
    %c0_118 = arith.constant 0 : index
    %86 = vector.load %arg14[%c0_117, %c0_118] : memref<10x420xf32, #tpu.memory_space<vmem>>, vector<5x84xf32>
    tpu.vector_store %arg14[%c0_117, %c0_118], %85 {strides = array<i32>} : memref<10x420xf32, #tpu.memory_space<vmem>>, vector<5x84xf32>,
    %87 = vector.extract_strided_slice %84 {offsets = [0, 0], sizes = [5, 84], strides = [1, 1]} : vector<7x84xf32> to vector<5x84xf32>
    %c0_119 = arith.constant 0 : index
    %c84 = arith.constant 84 : index
    %88 = vector.load %arg14[%c0_119, %c84] : memref<10x420xf32, #tpu.memory_space<vmem>>, vector<5x84xf32>
    tpu.vector_store %arg14[%c0_119, %c84], %87 {strides = array<i32>} : memref<10x420xf32, #tpu.memory_space<vmem>>, vector<5x84xf32>,
    %89 = vector.extract_strided_slice %77 {offsets = [1, 0], sizes = [5, 84], strides = [1, 1]} : vector<7x84xf32> to vector<5x84xf32>
    %c0_120 = arith.constant 0 : index
    %c168 = arith.constant 168 : index
    %90 = vector.load %arg14[%c0_120, %c168] : memref<10x420xf32, #tpu.memory_space<vmem>>, vector<5x84xf32>
    tpu.vector_store %arg14[%c0_120, %c168], %89 {strides = array<i32>} : memref<10x420xf32, #tpu.memory_space<vmem>>, vector<5x84xf32>,
    %91 = vector.extract_strided_slice %84 {offsets = [1, 0], sizes = [5, 84], strides = [1, 1]} : vector<7x84xf32> to vector<5x84xf32>
    %c0_121 = arith.constant 0 : index
    %c252 = arith.constant 252 : index
    %92 = vector.load %arg14[%c0_121, %c252] : memref<10x420xf32, #tpu.memory_space<vmem>>, vector<5x84xf32>
    tpu.vector_store %arg14[%c0_121, %c252], %91 {strides = array<i32>} : memref<10x420xf32, #tpu.memory_space<vmem>>, vector<5x84xf32>,
    %93 = vector.extract_strided_slice %77 {offsets = [2, 0], sizes = [5, 84], strides = [1, 1]} : vector<7x84xf32> to vector<5x84xf32>
    %c0_122 = arith.constant 0 : index
    %c336 = arith.constant 336 : index
    %94 = vector.load %arg14[%c0_122, %c336] : memref<10x420xf32, #tpu.memory_space<vmem>>, vector<5x84xf32>
    tpu.vector_store %arg14[%c0_122, %c336], %93 {strides = array<i32>} : memref<10x420xf32, #tpu.memory_space<vmem>>, vector<5x84xf32>,
    %95 = vector.extract_strided_slice %84 {offsets = [0, 0], sizes = [5, 84], strides = [1, 1]} : vector<7x84xf32> to vector<5x84xf32>
    %c5 = arith.constant 5 : index
    %c0_123 = arith.constant 0 : index
    %96 = vector.load %arg14[%c5, %c0_123] : memref<10x420xf32, #tpu.memory_space<vmem>>, vector<5x84xf32>
    tpu.vector_store %arg14[%c5, %c0_123], %95 {strides = array<i32>} : memref<10x420xf32, #tpu.memory_space<vmem>>, vector<5x84xf32>,
    %97 = vector.extract_strided_slice %77 {offsets = [1, 0], sizes = [5, 84], strides = [1, 1]} : vector<7x84xf32> to vector<5x84xf32>
    %c5_124 = arith.constant 5 : index
    %c84_125 = arith.constant 84 : index
    %98 = vector.load %arg14[%c5_124, %c84_125] : memref<10x420xf32, #tpu.memory_space<vmem>>, vector<5x84xf32>
    tpu.vector_store %arg14[%c5_124, %c84_125], %97 {strides = array<i32>} : memref<10x420xf32, #tpu.memory_space<vmem>>, vector<5x84xf32>,
    %99 = vector.extract_strided_slice %84 {offsets = [1, 0], sizes = [5, 84], strides = [1, 1]} : vector<7x84xf32> to vector<5x84xf32>
    %c5_126 = arith.constant 5 : index
    %c168_127 = arith.constant 168 : index
    %100 = vector.load %arg14[%c5_126, %c168_127] : memref<10x420xf32, #tpu.memory_space<vmem>>, vector<5x84xf32>
    tpu.vector_store %arg14[%c5_126, %c168_127], %99 {strides = array<i32>} : memref<10x420xf32, #tpu.memory_space<vmem>>, vector<5x84xf32>,
    %101 = vector.extract_strided_slice %77 {offsets = [2, 0], sizes = [5, 84], strides = [1, 1]} : vector<7x84xf32> to vector<5x84xf32>
    %c5_128 = arith.constant 5 : index
    %c252_129 = arith.constant 252 : index
    %102 = vector.load %arg14[%c5_128, %c252_129] : memref<10x420xf32, #tpu.memory_space<vmem>>, vector<5x84xf32>
    tpu.vector_store %arg14[%c5_128, %c252_129], %101 {strides = array<i32>} : memref<10x420xf32, #tpu.memory_space<vmem>>, vector<5x84xf32>,
    %103 = vector.extract_strided_slice %84 {offsets = [2, 0], sizes = [5, 84], strides = [1, 1]} : vector<7x84xf32> to vector<5x84xf32>
    %c5_130 = arith.constant 5 : index
    %c336_131 = arith.constant 336 : index
    %104 = vector.load %arg14[%c5_130, %c336_131] : memref<10x420xf32, #tpu.memory_space<vmem>>, vector<5x84xf32>
    tpu.vector_store %arg14[%c5_130, %c336_131], %103 {strides = array<i32>} : memref<10x420xf32, #tpu.memory_space<vmem>>, vector<5x84xf32>,
    %c0_132 = arith.constant 0 : index
    %c0_133 = arith.constant 0 : index
    %105 = vector.load %arg14[%c0_132, %c0_133] : memref<10x420xf32, #tpu.memory_space<vmem>>, vector<10x420xf32>
    %106 = arith.truncf %105 : vector<10x420xf32> to vector<10x420xbf16>
    %c0_134 = arith.constant 0 : index
    %c0_135 = arith.constant 0 : index
    %107 = vector.load %arg4[%c0_134, %c0_135] : memref<420x160xbf16, #tpu.memory_space<vmem>>, vector<420x160xbf16>
    %cst_136 = arith.constant dense<0.000000e+00> : vector<10x160xf32>
    %108 = tpu.matmul %106, %107, %cst_136 {dimension_numbers = #tpu.dot_dimension_numbers<[1], [0], [0], [1], [0, 0, 1, 1], [], []>} : vector<10x420xbf16>, vector<420x160xbf16>, vector<10x160xf32> -> vector<10x160xf32>
    %109 = vector.extract_strided_slice %108 {offsets = [0, 0], sizes = [5, 160], strides = [1, 1]} : vector<10x160xf32> to vector<5x160xf32>
    %110 = vector.extract_strided_slice %108 {offsets = [5, 0], sizes = [5, 160], strides = [1, 1]} : vector<10x160xf32> to vector<5x160xf32>
    %111 = arith.maximumf %109, %110 : vector<5x160xf32>
    %112 = vector.extract_strided_slice %111 {offsets = [0, 0], sizes = [5, 80], strides = [1, 1]} : vector<5x160xf32> to vector<5x80xf32>
    %113 = vector.extract_strided_slice %111 {offsets = [0, 80], sizes = [5, 80], strides = [1, 1]} : vector<5x160xf32> to vector<5x80xf32>
    %114 = arith.maximumf %112, %113 : vector<5x80xf32>
    %c0_137 = arith.constant 0 : index
    %c0_138 = arith.constant 0 : index
    %115 = vector.load %arg5[%c0_137, %c0_138] : memref<1x80xf32, #tpu.memory_space<vmem>>, vector<1x80xf32>
    %116 = vector.broadcast %115 : vector<1x80xf32> to vector<5x80xf32>
    %117 = arith.addf %114, %116 : vector<5x80xf32>
    %cst_139 = arith.constant 0.000000e+00 : f32
    %118 = vector.broadcast %cst_139 : f32 to vector<5x80xf32>
    %119 = arith.maximumf %117, %118 : vector<5x80xf32>
    %120 = vector.extract_strided_slice %119 {offsets = [0, 0], sizes = [1, 80], strides = [1, 1]} : vector<5x80xf32> to vector<1x80xf32>
    %c0_140 = arith.constant 0 : index
    %c0_141 = arith.constant 0 : index
    %121 = vector.load %arg15[%c0_140, %c0_141] : memref<1x400xf32, #tpu.memory_space<vmem>>, vector<1x80xf32>
    tpu.vector_store %arg15[%c0_140, %c0_141], %120 {strides = array<i32>} : memref<1x400xf32, #tpu.memory_space<vmem>>, vector<1x80xf32>,
    %122 = vector.extract_strided_slice %119 {offsets = [1, 0], sizes = [1, 80], strides = [1, 1]} : vector<5x80xf32> to vector<1x80xf32>
    %c0_142 = arith.constant 0 : index
    %c80 = arith.constant 80 : index
    %123 = vector.load %arg15[%c0_142, %c80] : memref<1x400xf32, #tpu.memory_space<vmem>>, vector<1x80xf32>
    tpu.vector_store %arg15[%c0_142, %c80], %122 {strides = array<i32>} : memref<1x400xf32, #tpu.memory_space<vmem>>, vector<1x80xf32>,
    %124 = vector.extract_strided_slice %119 {offsets = [2, 0], sizes = [1, 80], strides = [1, 1]} : vector<5x80xf32> to vector<1x80xf32>
    %c0_143 = arith.constant 0 : index
    %c160 = arith.constant 160 : index
    %125 = vector.load %arg15[%c0_143, %c160] : memref<1x400xf32, #tpu.memory_space<vmem>>, vector<1x80xf32>
    tpu.vector_store %arg15[%c0_143, %c160], %124 {strides = array<i32>} : memref<1x400xf32, #tpu.memory_space<vmem>>, vector<1x80xf32>,
    %126 = vector.extract_strided_slice %119 {offsets = [3, 0], sizes = [1, 80], strides = [1, 1]} : vector<5x80xf32> to vector<1x80xf32>
    %c0_144 = arith.constant 0 : index
    %c240 = arith.constant 240 : index
    %127 = vector.load %arg15[%c0_144, %c240] : memref<1x400xf32, #tpu.memory_space<vmem>>, vector<1x80xf32>
    tpu.vector_store %arg15[%c0_144, %c240], %126 {strides = array<i32>} : memref<1x400xf32, #tpu.memory_space<vmem>>, vector<1x80xf32>,
    %128 = vector.extract_strided_slice %119 {offsets = [4, 0], sizes = [1, 80], strides = [1, 1]} : vector<5x80xf32> to vector<1x80xf32>
    %c0_145 = arith.constant 0 : index
    %c320 = arith.constant 320 : index
    %129 = vector.load %arg15[%c0_145, %c320] : memref<1x400xf32, #tpu.memory_space<vmem>>, vector<1x80xf32>
    tpu.vector_store %arg15[%c0_145, %c320], %128 {strides = array<i32>} : memref<1x400xf32, #tpu.memory_space<vmem>>, vector<1x80xf32>,
    %c0_146 = arith.constant 0 : index
    %c0_147 = arith.constant 0 : index
    %130 = vector.load %arg15[%c0_146, %c0_147] : memref<1x400xf32, #tpu.memory_space<vmem>>, vector<1x400xf32>
    %131 = arith.truncf %130 : vector<1x400xf32> to vector<1x400xbf16>
    %c0_148 = arith.constant 0 : index
    %c0_149 = arith.constant 0 : index
    %132 = vector.load %arg6[%c0_148, %c0_149] : memref<400x120xbf16, #tpu.memory_space<vmem>>, vector<400x120xbf16>
    %cst_150 = arith.constant dense<0.000000e+00> : vector<1x120xf32>
    %133 = tpu.matmul %131, %132, %cst_150 {dimension_numbers = #tpu.dot_dimension_numbers<[1], [0], [0], [1], [0, 0, 1, 1], [], []>} : vector<1x400xbf16>, vector<400x120xbf16>, vector<1x120xf32> -> vector<1x120xf32>
    %c0_151 = arith.constant 0 : index
    %c0_152 = arith.constant 0 : index
    %134 = vector.load %arg7[%c0_151, %c0_152] : memref<1x120xf32, #tpu.memory_space<vmem>>, vector<1x120xf32>
    %135 = arith.addf %133, %134 : vector<1x120xf32>
    %cst_153 = arith.constant 0.000000e+00 : f32
    %136 = vector.broadcast %cst_153 : f32 to vector<1x120xf32>
    %137 = arith.maximumf %135, %136 : vector<1x120xf32>
    %138 = arith.truncf %137 : vector<1x120xf32> to vector<1x120xbf16>
    %c0_154 = arith.constant 0 : index
    %c0_155 = arith.constant 0 : index
    %139 = vector.load %arg8[%c0_154, %c0_155] : memref<120x84xbf16, #tpu.memory_space<vmem>>, vector<120x84xbf16>
    %cst_156 = arith.constant dense<0.000000e+00> : vector<1x84xf32>
    %140 = tpu.matmul %138, %139, %cst_156 {dimension_numbers = #tpu.dot_dimension_numbers<[1], [0], [0], [1], [0, 0, 1, 1], [], []>} : vector<1x120xbf16>, vector<120x84xbf16>, vector<1x84xf32> -> vector<1x84xf32>
    %c0_157 = arith.constant 0 : index
    %c0_158 = arith.constant 0 : index
    %141 = vector.load %arg9[%c0_157, %c0_158] : memref<1x84xf32, #tpu.memory_space<vmem>>, vector<1x84xf32>
    %142 = arith.addf %140, %141 : vector<1x84xf32>
    %cst_159 = arith.constant 0.000000e+00 : f32
    %143 = vector.broadcast %cst_159 : f32 to vector<1x84xf32>
    %144 = arith.maximumf %142, %143 : vector<1x84xf32>
    %145 = arith.truncf %144 : vector<1x84xf32> to vector<1x84xbf16>
    %c0_160 = arith.constant 0 : index
    %c0_161 = arith.constant 0 : index
    %146 = vector.load %arg10[%c0_160, %c0_161] : memref<84x128xbf16, #tpu.memory_space<vmem>>, vector<84x128xbf16>
    %cst_162 = arith.constant dense<0.000000e+00> : vector<1x128xf32>
    %147 = tpu.matmul %145, %146, %cst_162 {dimension_numbers = #tpu.dot_dimension_numbers<[1], [0], [0], [1], [0, 0, 1, 1], [], []>} : vector<1x84xbf16>, vector<84x128xbf16>, vector<1x128xf32> -> vector<1x128xf32>
    %c0_163 = arith.constant 0 : index
    %c0_164 = arith.constant 0 : index
    %148 = vector.load %arg11[%c0_163, %c0_164] : memref<1x128xf32, #tpu.memory_space<vmem>>, vector<1x128xf32>
    %149 = arith.addf %147, %148 : vector<1x128xf32>
    %c0_165 = arith.constant 0 : index
    %c0_166 = arith.constant 0 : index
    %c0_167 = arith.constant 0 : index
    %150 = vector.load %arg12[%c0_165, %c0_166, %c0_167] : memref<1x1x128xf32, #tpu.memory_space<vmem>>, vector<1x1x128xf32>
    %151 = vector.shape_cast %150 : vector<1x1x128xf32> to vector<1x128xf32>
    %152 = vector.shape_cast %149 : vector<1x128xf32> to vector<1x1x128xf32>
    tpu.vector_store %arg12[%c0_165, %c0_166, %c0_167], %152 {strides = array<i32>} : memref<1x1x128xf32, #tpu.memory_space<vmem>>, vector<1x1x128xf32>,
    return
  }
  func.func @transform_0(%arg0: i32) -> (i32, i32, i32, i32) {
    %c0_i32 = arith.constant 0 : i32
    %c0_i32_0 = arith.constant 0 : i32
    %c0_i32_1 = arith.constant 0 : i32
    %c0_i32_2 = arith.constant 0 : i32
    return %arg0, %c0_i32, %c0_i32_0, %c0_i32_1 : i32, i32, i32, i32
  }
  func.func @transform_1(%arg0: i32) -> (i32, i32) {
    %c0_i32 = arith.constant 0 : i32
    %c0_i32_0 = arith.constant 0 : i32
    %c0_i32_1 = arith.constant 0 : i32
    return %c0_i32, %c0_i32_0 : i32, i32
  }
  func.func @transform_2(%arg0: i32) -> (i32, i32) {
    %c0_i32 = arith.constant 0 : i32
    %c0_i32_0 = arith.constant 0 : i32
    %c0_i32_1 = arith.constant 0 : i32
    return %c0_i32, %c0_i32_0 : i32, i32
  }
  func.func @transform_3(%arg0: i32) -> (i32, i32) {
    %c0_i32 = arith.constant 0 : i32
    %c0_i32_0 = arith.constant 0 : i32
    %c0_i32_1 = arith.constant 0 : i32
    return %c0_i32, %c0_i32_0 : i32, i32
  }
  func.func @transform_4(%arg0: i32) -> (i32, i32) {
    %c0_i32 = arith.constant 0 : i32
    %c0_i32_0 = arith.constant 0 : i32
    %c0_i32_1 = arith.constant 0 : i32
    return %c0_i32, %c0_i32_0 : i32, i32
  }
  func.func @transform_5(%arg0: i32) -> (i32, i32) {
    %c0_i32 = arith.constant 0 : i32
    %c0_i32_0 = arith.constant 0 : i32
    %c0_i32_1 = arith.constant 0 : i32
    return %c0_i32, %c0_i32_0 : i32, i32
  }
  func.func @transform_6(%arg0: i32) -> (i32, i32) {
    %c0_i32 = arith.constant 0 : i32
    %c0_i32_0 = arith.constant 0 : i32
    %c0_i32_1 = arith.constant 0 : i32
    return %c0_i32, %c0_i32_0 : i32, i32
  }
  func.func @transform_7(%arg0: i32) -> (i32, i32) {
    %c0_i32 = arith.constant 0 : i32
    %c0_i32_0 = arith.constant 0 : i32
    %c0_i32_1 = arith.constant 0 : i32
    return %c0_i32, %c0_i32_0 : i32, i32
  }
  func.func @transform_8(%arg0: i32) -> (i32, i32) {
    %c0_i32 = arith.constant 0 : i32
    %c0_i32_0 = arith.constant 0 : i32
    %c0_i32_1 = arith.constant 0 : i32
    return %c0_i32, %c0_i32_0 : i32, i32
  }
  func.func @transform_9(%arg0: i32) -> (i32, i32) {
    %c0_i32 = arith.constant 0 : i32
    %c0_i32_0 = arith.constant 0 : i32
    %c0_i32_1 = arith.constant 0 : i32
    return %c0_i32, %c0_i32_0 : i32, i32
  }
  func.func @transform_10(%arg0: i32) -> (i32, i32) {
    %c0_i32 = arith.constant 0 : i32
    %c0_i32_0 = arith.constant 0 : i32
    %c0_i32_1 = arith.constant 0 : i32
    return %c0_i32, %c0_i32_0 : i32, i32
  }
  func.func @transform_11(%arg0: i32) -> (i32, i32, i32) {
    %c0_i32 = arith.constant 0 : i32
    %c0_i32_0 = arith.constant 0 : i32
    %c0_i32_1 = arith.constant 0 : i32
    return %arg0, %c0_i32, %c0_i32_0 : i32, i32, i32
  }
}

</mosaic_0001>

<llo_original>
// kernel: net_forward.1
$region0: #{net_forward.1}
  #allocation0 [shape = 'u32[]', space=smem, size = 0x4, offset = 0x4, fixed_abs, tag = 'smem constant byte address 0x4 - core index']
  #allocation1 [shape = 'u32[144,128]{1,0:T(1,128)}', space=vmem, size = 0x12000, scoped, tag = 'internal scratch']
  #allocation2 [shape = 'f32[28,480]{1,0:T(8,128)}', space=vmem, size = 0x10000, scoped, tag = 'scratch operand']
  #allocation3 [shape = 'f32[10,420]{1,0:T(8,128)}', space=vmem, size = 0x8000, scoped, tag = 'scratch operand']
  #allocation4 [shape = 'f32[1,400]{1,0:T(1,128)}', space=vmem, size = 0x800, scoped, tag = 'scratch operand']
  %s0 = inlined_call_operand.vmem [shape: f32[2,4,8,96], index: 0, kind: input, shape index: {}]
  %s1 = inlined_call_operand.vmem [shape: bf16[480,168], index: 1, kind: input, shape index: {}]
  %s2 = inlined_call_operand.vmem [shape: f32[1,84], index: 2, kind: input, shape index: {}]
  %s3 = inlined_call_operand.vmem [shape: bf16[420,160], index: 3, kind: input, shape index: {}]
  %s4 = inlined_call_operand.vmem [shape: f32[1,80], index: 4, kind: input, shape index: {}]
  %s5 = inlined_call_operand.vmem [shape: bf16[400,120], index: 5, kind: input, shape index: {}]
  %s6 = inlined_call_operand.vmem [shape: f32[1,120], index: 6, kind: input, shape index: {}]
  %s7 = inlined_call_operand.vmem [shape: bf16[120,84], index: 7, kind: input, shape index: {}]
  %s8 = inlined_call_operand.vmem [shape: f32[1,84], index: 8, kind: input, shape index: {}]
  %s9 = inlined_call_operand.vmem [shape: bf16[84,128], index: 9, kind: input, shape index: {}]
  %s10 = inlined_call_operand.vmem [shape: f32[1,128], index: 10, kind: input, shape index: {}]
  %s11 = inlined_call_operand.hbm [shape: f32[2,1,128], index: 11, kind: output, shape index: {}]
  %s12 = sld [smem:[#allocation0]]
  $region77: #{net_forward.1} parent=0
    _
  %s14 = ssub.s32 1, %s12
  %s15 = scalar_select 0, %s14, %s12
  $region1: #{net_forward.1} parent=0
    #allocation5 [shape = 'u8[1024]{0}', space=vmem, size = 0x400, scoped, tag = 'output window, operand 0']
    #allocation6 [shape = 's32[2]{0}', space=sflag, size = 0x8, scoped, tag = 'scoped memory for net_forward.1']
    %16 = vsyncpa [#allocation6], 0
    %s17 = scalar_lea.sflag [#allocation6], 1
    %18 = vsyncpa %s17, 0
    loop: start=0, step=1, limit=4
    $region2: #{net_forward.1} parent=1 // loop_pre_header
      _
    $region3: #{net_forward.1} parent=1 // loop_header
      %s20 = sphi 0, %s24
      %p21 = scmp.ge.s32.totalorder %s20, 4
      %s30 = sphi 0, %s32
      %s33 = sphi 0, %s30
      %s34 = sphi 0, %s33
      %s50 = sphi 0, %s34
      %s54 = sphi 0, %s54
      %s56 = sphi 0, %s54
      %s57 = sphi 0, %s56
      %s71 = sphi 0, %s57
      %s75 = sphi 0, %s75
      %s77 = sphi 0, %s75
      %s78 = sphi 0, %s77
      %s92 = sphi 0, %s78
      %s96 = sphi 0, %s96
      %s98 = sphi 0, %s96
      %s99 = sphi 0, %s98
      %s113 = sphi 0, %s99
      %s117 = sphi 0, %s117
      %s119 = sphi 0, %s117
      %s120 = sphi 0, %s119
      %s134 = sphi 0, %s120
      %s138 = sphi 0, %s138
      %s140 = sphi 0, %s138
      %s141 = sphi 0, %s140
      %s155 = sphi 0, %s141
      %s159 = sphi 0, %s159
      %s161 = sphi 0, %s159
      %s162 = sphi 0, %s161
      %s176 = sphi 0, %s162
      %s180 = sphi 0, %s180
      %s182 = sphi 0, %s180
      %s183 = sphi 0, %s182
      %s197 = sphi 0, %s183
      %s201 = sphi 0, %s201
      %s203 = sphi 0, %s201
      %s204 = sphi 0, %s203
      %s218 = sphi 0, %s204
      %s222 = sphi 0, %s222
      %s224 = sphi 0, %s222
      %s225 = sphi 0, %s224
      %s239 = sphi 0, %s225
      %s243 = sphi 0, %s243
      %s245 = sphi 0, %s243
      %s246 = sphi 0, %s245
      %s260 = sphi 0, %s246
      %s266 = sphi 0, %s268
      %s269 = sphi 0, %s266
      %s270 = sphi 0, %s269
      %s286 = sphi 0, %s270
    $region4: #{net_forward.1} parent=1 // loop_header_branch
      %23 = sbr.rel (%p21) target = $region8
    $region5: #{net_forward.1} parent=1 // loop_body
      %s25 = ssub.s32 %s20, 1
      %s26 = ssub.s32 %s20, 2
      %s27 = sadd.s32 %s20, 1
      %s28 = ssub.s32 %s20, %s27
      %p29 = scmp.eq.s32.totalorder %s28, 0
      %s31 = sadd.s32 %s30, 1
      %s32 = scalar_select %p29, %s30, %s31
      %p35 = pneg %p29
      %p36 = scmp.eq.s32.totalorder %s20, 1
      %p37 = por %p35, %p36
      %p38 = scmp.ne.s32.totalorder %s30, %s33
      %p39 = scmp.eq.s32.totalorder %s20, 0
      %p40 = por %p38, %p39
      %p41 = scmp.ne.s32.totalorder %s30, %s33
      %p42 = scmp.eq.s32.totalorder %s25, 1
      %p43 = por %p41, %p42
      %p44 = scmp.ne.s32.totalorder %s33, %s34
      %p45 = scmp.eq.s32.totalorder %s25, 0
      %p46 = por %p44, %p45
      %p47 = scmp.ne.s32.totalorder %s33, %s34
      %p48 = scmp.eq.s32.totalorder %s26, 1
      %p49 = por %p47, %p48
      %p51 = scmp.ne.s32.totalorder %s34, %s50
      %p52 = scmp.eq.s32.totalorder %s26, 0
      %p53 = por %p51, %p52
      %s55 = sadd.s32 %s54, 1
      %p58 = scmp.eq.s32.totalorder %s20, 1
      %p59 = scmp.ne.s32.totalorder %s54, %s56
      %p60 = scmp.eq.s32.totalorder %s20, 0
      %p61 = por %p59, %p60
      %p62 = scmp.ne.s32.totalorder %s54, %s56
      %p63 = scmp.eq.s32.totalorder %s25, 1
      %p64 = por %p62, %p63
      %p65 = scmp.ne.s32.totalorder %s56, %s57
      %p66 = scmp.eq.s32.totalorder %s25, 0
      %p67 = por %p65, %p66
      %p68 = scmp.ne.s32.totalorder %s56, %s57
      %p69 = scmp.eq.s32.totalorder %s26, 1
      %p70 = por %p68, %p69
      %p72 = scmp.ne.s32.totalorder %s57, %s71
      %p73 = scmp.eq.s32.totalorder %s26, 0
      %p74 = por %p72, %p73
      %s76 = sadd.s32 %s75, 1
      %p79 = scmp.eq.s32.totalorder %s20, 1
      %p80 = scmp.ne.s32.totalorder %s75, %s77
      %p81 = scmp.eq.s32.totalorder %s20, 0
      %p82 = por %p80, %p81
      %p83 = scmp.ne.s32.totalorder %s75, %s77
      %p84 = scmp.eq.s32.totalorder %s25, 1
      %p85 = por %p83, %p84
      %p86 = scmp.ne.s32.totalorder %s77, %s78
      %p87 = scmp.eq.s32.totalorder %s25, 0
      %p88 = por %p86, %p87
      %p89 = scmp.ne.s32.totalorder %s77, %s78
      %p90 = scmp.eq.s32.totalorder %s26, 1
      %p91 = por %p89, %p90
      %p93 = scmp.ne.s32.totalorder %s78, %s92
      %p94 = scmp.eq.s32.totalorder %s26, 0
      %p95 = por %p93, %p94
      %s97 = sadd.s32 %s96, 1
      %p100 = scmp.eq.s32.totalorder %s20, 1
      %p101 = scmp.ne.s32.totalorder %s96, %s98
      %p102 = scmp.eq.s32.totalorder %s20, 0
      %p103 = por %p101, %p102
      %p104 = scmp.ne.s32.totalorder %s96, %s98
      %p105 = scmp.eq.s32.totalorder %s25, 1
      %p106 = por %p104, %p105
      %p107 = scmp.ne.s32.totalorder %s98, %s99
      %p108 = scmp.eq.s32.totalorder %s25, 0
      %p109 = por %p107, %p108
      %p110 = scmp.ne.s32.totalorder %s98, %s99
      %p111 = scmp.eq.s32.totalorder %s26, 1
      %p112 = por %p110, %p111
      %p114 = scmp.ne.s32.totalorder %s99, %s113
      %p115 = scmp.eq.s32.totalorder %s26, 0
      %p116 = por %p114, %p115
      %s118 = sadd.s32 %s117, 1
      %p121 = scmp.eq.s32.totalorder %s20, 1
      %p122 = scmp.ne.s32.totalorder %s117, %s119
      %p123 = scmp.eq.s32.totalorder %s20, 0
      %p124 = por %p122, %p123
      %p125 = scmp.ne.s32.totalorder %s117, %s119
      %p126 = scmp.eq.s32.totalorder %s25, 1
      %p127 = por %p125, %p126
      %p128 = scmp.ne.s32.totalorder %s119, %s120
      %p129 = scmp.eq.s32.totalorder %s25, 0
      %p130 = por %p128, %p129
      %p131 = scmp.ne.s32.totalorder %s119, %s120
      %p132 = scmp.eq.s32.totalorder %s26, 1
      %p133 = por %p131, %p132
      %p135 = scmp.ne.s32.totalorder %s120, %s134
      %p136 = scmp.eq.s32.totalorder %s26, 0
      %p137 = por %p135, %p136
      %s139 = sadd.s32 %s138, 1
      %p142 = scmp.eq.s32.totalorder %s20, 1
      %p143 = scmp.ne.s32.totalorder %s138, %s140
      %p144 = scmp.eq.s32.totalorder %s20, 0
      %p145 = por %p143, %p144
      %p146 = scmp.ne.s32.totalorder %s138, %s140
      %p147 = scmp.eq.s32.totalorder %s25, 1
      %p148 = por %p146, %p147
      %p149 = scmp.ne.s32.totalorder %s140, %s141
      %p150 = scmp.eq.s32.totalorder %s25, 0
      %p151 = por %p149, %p150
      %p152 = scmp.ne.s32.totalorder %s140, %s141
      %p153 = scmp.eq.s32.totalorder %s26, 1
      %p154 = por %p152, %p153
      %p156 = scmp.ne.s32.totalorder %s141, %s155
      %p157 = scmp.eq.s32.totalorder %s26, 0
      %p158 = por %p156, %p157
      %s160 = sadd.s32 %s159, 1
      %p163 = scmp.eq.s32.totalorder %s20, 1
      %p164 = scmp.ne.s32.totalorder %s159, %s161
      %p165 = scmp.eq.s32.totalorder %s20, 0
      %p166 = por %p164, %p165
      %p167 = scmp.ne.s32.totalorder %s159, %s161
      %p168 = scmp.eq.s32.totalorder %s25, 1
      %p169 = por %p167, %p168
      %p170 = scmp.ne.s32.totalorder %s161, %s162
      %p171 = scmp.eq.s32.totalorder %s25, 0
      %p172 = por %p170, %p171
      %p173 = scmp.ne.s32.totalorder %s161, %s162
      %p174 = scmp.eq.s32.totalorder %s26, 1
      %p175 = por %p173, %p174
      %p177 = scmp.ne.s32.totalorder %s162, %s176
      %p178 = scmp.eq.s32.totalorder %s26, 0
      %p179 = por %p177, %p178
      %s181 = sadd.s32 %s180, 1
      %p184 = scmp.eq.s32.totalorder %s20, 1
      %p185 = scmp.ne.s32.totalorder %s180, %s182
      %p186 = scmp.eq.s32.totalorder %s20, 0
      %p187 = por %p185, %p186
      %p188 = scmp.ne.s32.totalorder %s180, %s182
      %p189 = scmp.eq.s32.totalorder %s25, 1
      %p190 = por %p188, %p189
      %p191 = scmp.ne.s32.totalorder %s182, %s183
      %p192 = scmp.eq.s32.totalorder %s25, 0
      %p193 = por %p191, %p192
      %p194 = scmp.ne.s32.totalorder %s182, %s183
      %p195 = scmp.eq.s32.totalorder %s26, 1
      %p196 = por %p194, %p195
      %p198 = scmp.ne.s32.totalorder %s183, %s197
      %p199 = scmp.eq.s32.totalorder %s26, 0
      %p200 = por %p198, %p199
      %s202 = sadd.s32 %s201, 1
      %p205 = scmp.eq.s32.totalorder %s20, 1
      %p206 = scmp.ne.s32.totalorder %s201, %s203
      %p207 = scmp.eq.s32.totalorder %s20, 0
      %p208 = por %p206, %p207
      %p209 = scmp.ne.s32.totalorder %s201, %s203
      %p210 = scmp.eq.s32.totalorder %s25, 1
      %p211 = por %p209, %p210
      %p212 = scmp.ne.s32.totalorder %s203, %s204
      %p213 = scmp.eq.s32.totalorder %s25, 0
      %p214 = por %p212, %p213
      %p215 = scmp.ne.s32.totalorder %s203, %s204
      %p216 = scmp.eq.s32.totalorder %s26, 1
      %p217 = por %p215, %p216
      %p219 = scmp.ne.s32.totalorder %s204, %s218
      %p220 = scmp.eq.s32.totalorder %s26, 0
      %p221 = por %p219, %p220
      %s223 = sadd.s32 %s222, 1
      %p226 = scmp.eq.s32.totalorder %s20, 1
      %p227 = scmp.ne.s32.totalorder %s222, %s224
      %p228 = scmp.eq.s32.totalorder %s20, 0
      %p229 = por %p227, %p228
      %p230 = scmp.ne.s32.totalorder %s222, %s224
      %p231 = scmp.eq.s32.totalorder %s25, 1
      %p232 = por %p230, %p231
      %p233 = scmp.ne.s32.totalorder %s224, %s225
      %p234 = scmp.eq.s32.totalorder %s25, 0
      %p235 = por %p233, %p234
      %p236 = scmp.ne.s32.totalorder %s224, %s225
      %p237 = scmp.eq.s32.totalorder %s26, 1
      %p238 = por %p236, %p237
      %p240 = scmp.ne.s32.totalorder %s225, %s239
      %p241 = scmp.eq.s32.totalorder %s26, 0
      %p242 = por %p240, %p241
      %s244 = sadd.s32 %s243, 1
      %p247 = scmp.eq.s32.totalorder %s20, 1
      %p248 = scmp.ne.s32.totalorder %s243, %s245
      %p249 = scmp.eq.s32.totalorder %s20, 0
      %p250 = por %p248, %p249
      %p251 = scmp.ne.s32.totalorder %s243, %s245
      %p252 = scmp.eq.s32.totalorder %s25, 1
      %p253 = por %p251, %p252
      %p254 = scmp.ne.s32.totalorder %s245, %s246
      %p255 = scmp.eq.s32.totalorder %s25, 0
      %p256 = por %p254, %p255
      %p257 = scmp.ne.s32.totalorder %s245, %s246
      %p258 = scmp.eq.s32.totalorder %s26, 1
      %p259 = por %p257, %p258
      %p261 = scmp.ne.s32.totalorder %s246, %s260
      %p262 = scmp.eq.s32.totalorder %s26, 0
      %p263 = por %p261, %p262
      %s264 = ssub.s32 %s20, %s27
      %p265 = scmp.eq.s32.totalorder %s264, 0
      %s267 = sadd.s32 %s266, 1
      %s268 = scalar_select %p265, %s266, %s267
      %p271 = pneg %p265
      %p272 = scmp.eq.s32.totalorder %s20, 1
      %p273 = por %p271, %p272
      %p274 = scmp.ne.s32.totalorder %s266, %s269
      %p275 = scmp.eq.s32.totalorder %s20, 0
      %p276 = por %p274, %p275
      %p277 = scmp.ne.s32.totalorder %s266, %s269
      %p278 = scmp.eq.s32.totalorder %s25, 1
      %p279 = por %p277, %p278
      %p280 = scmp.ne.s32.totalorder %s269, %s270
      %p281 = scmp.eq.s32.totalorder %s25, 0
      %p282 = por %p280, %p281
      %p283 = scmp.ne.s32.totalorder %s269, %s270
      %p284 = scmp.eq.s32.totalorder %s26, 1
      %p285 = por %p283, %p284
      %p287 = scmp.ne.s32.totalorder %s270, %s286
      %p288 = scmp.eq.s32.totalorder %s26, 0
      %p289 = por %p287, %p288
      %p290 = scmp.le.s32.totalorder 1, %s20
      %p291 = scmp.lt.s32.totalorder %s20, 3
      %p292 = pnand %p290, %p291
      %p293 = pneg %p292
      // Predicated region
      $region9: #{net_forward.1} parent=5 // pred_check
        _
      $region10: #{net_forward.1} parent=5 // pred_check_branch
        %295 = sbr.rel (%p292) target = $region12
      $region11: #{net_forward.1} parent=5 // pred_region
        %s296 = ssub.s32 %s20, 1
        // Predicated region
        $region13: #{net_forward.1} parent=11 // pred_check
          %p297 = pneg %p67
        $region14: #{net_forward.1} parent=11 // pred_check_branch
          %299 = sbr.rel (%p297) target = $region16
        $region15: #{net_forward.1} parent=11 // pred_region
          _
        $region16: #{net_forward.1} parent=11 // pred_fallthru
          _
        // Predicated region
        $region17: #{net_forward.1} parent=11 // pred_check
          %p300 = pneg %p88
        $region18: #{net_forward.1} parent=11 // pred_check_branch
          %302 = sbr.rel (%p300) target = $region20
        $region19: #{net_forward.1} parent=11 // pred_region
          _
        $region20: #{net_forward.1} parent=11 // pred_fallthru
          _
        // Predicated region
        $region21: #{net_forward.1} parent=11 // pred_check
          %p303 = pneg %p109
        $region22: #{net_forward.1} parent=11 // pred_check_branch
          %305 = sbr.rel (%p303) target = $region24
        $region23: #{net_forward.1} parent=11 // pred_region
          _
        $region24: #{net_forward.1} parent=11 // pred_fallthru
          _
        // Predicated region
        $region25: #{net_forward.1} parent=11 // pred_check
          %p306 = pneg %p130
        $region26: #{net_forward.1} parent=11 // pred_check_branch
          %308 = sbr.rel (%p306) target = $region28
        $region27: #{net_forward.1} parent=11 // pred_region
          _
        $region28: #{net_forward.1} parent=11 // pred_fallthru
          _
        // Predicated region
        $region29: #{net_forward.1} parent=11 // pred_check
          %p309 = pneg %p151
        $region30: #{net_forward.1} parent=11 // pred_check_branch
          %311 = sbr.rel (%p309) target = $region32
        $region31: #{net_forward.1} parent=11 // pred_region
          _
        $region32: #{net_forward.1} parent=11 // pred_fallthru
          _
        // Predicated region
        $region33: #{net_forward.1} parent=11 // pred_check
          %p312 = pneg %p172
        $region34: #{net_forward.1} parent=11 // pred_check_branch
          %314 = sbr.rel (%p312) target = $region36
        $region35: #{net_forward.1} parent=11 // pred_region
          _
        $region36: #{net_forward.1} parent=11 // pred_fallthru
          _
        // Predicated region
        $region37: #{net_forward.1} parent=11 // pred_check
          %p315 = pneg %p193
        $region38: #{net_forward.1} parent=11 // pred_check_branch
          %317 = sbr.rel (%p315) target = $region40
        $region39: #{net_forward.1} parent=11 // pred_region
          _
        $region40: #{net_forward.1} parent=11 // pred_fallthru
          _
        // Predicated region
        $region41: #{net_forward.1} parent=11 // pred_check
          %p318 = pneg %p214
        $region42: #{net_forward.1} parent=11 // pred_check_branch
          %320 = sbr.rel (%p318) target = $region44
        $region43: #{net_forward.1} parent=11 // pred_region
          _
        $region44: #{net_forward.1} parent=11 // pred_fallthru
          _
        // Predicated region
        $region45: #{net_forward.1} parent=11 // pred_check
          %p321 = pneg %p235
        $region46: #{net_forward.1} parent=11 // pred_check_branch
          %323 = sbr.rel (%p321) target = $region48
        $region47: #{net_forward.1} parent=11 // pred_region
          _
        $region48: #{net_forward.1} parent=11 // pred_fallthru
          _
        // Predicated region
        $region49: #{net_forward.1} parent=11 // pred_check
          %p324 = pneg %p256
        $region50: #{net_forward.1} parent=11 // pred_check_branch
          %326 = sbr.rel (%p324) target = $region52
        $region51: #{net_forward.1} parent=11 // pred_region
          _
        $region52: #{net_forward.1} parent=11 // pred_fallthru
          _
      $region12: #{net_forward.1} parent=5 // pred_fallthru
        _
      %p327 = scmp.lt.s32.totalorder %s20, 2
      // Predicated region
      $region53: #{net_forward.1} parent=5 // pred_check
        %p328 = pneg %p327
      $region54: #{net_forward.1} parent=5 // pred_check_branch
        %330 = sbr.rel (%p328) target = $region56
      $region55: #{net_forward.1} parent=5 // pred_region
        // Predicated region
        $region57: #{net_forward.1} parent=55 // pred_check
          %p331 = pneg %p40
        $region58: #{net_forward.1} parent=55 // pred_check_branch
          %333 = sbr.rel (%p331) target = $region60
        $region59: #{net_forward.1} parent=55 // pred_region
          %p334 = scmp.lt.s32.totalorder %s20, 1
          %s335 = scalar_select %p334, %s20, 1
          %s336 = smul.addr %s335, 4
          %s337 = smul.addr %s336, 8
          %s338 = scalar_lea.vmem %s0, %s337
        $region60: #{net_forward.1} parent=55 // pred_fallthru
          _
      $region56: #{net_forward.1} parent=5 // pred_fallthru
        _
      %p339 = scmp.le.s32.totalorder 1, %s20
      %p340 = scmp.lt.s32.totalorder %s20, 3
      %p341 = pnand %p339, %p340
      %p342 = pneg %p341
      // Predicated region
      $region61: #{net_forward.1} parent=5 // pred_check
        _
      $region62: #{net_forward.1} parent=5 // pred_check_branch
        %344 = sbr.rel (%p341) target = $region64
      $region63: #{net_forward.1} parent=5 // pred_region
        %s345 = ssub.s32 %s20, 1
        %p346 = scmp.lt.s32.totalorder %s25, 1
        %s347 = scalar_select %p346, %s25, 1
        %s348 = smul.addr %s347, 4
        %s349 = smul.addr %s348, 8
        %s350 = scalar_lea.vmem %s0, %s349
        %p351 = pneg %p46
        %p352 = pneg %p43
        %p353 = pneg %p67
        %p354 = pneg %p64
        %p355 = pneg %p88
        %p356 = pneg %p85
        %p357 = pneg %p109
        %p358 = pneg %p106
        %p359 = pneg %p130
        %p360 = pneg %p127
        %p361 = pneg %p151
        %p362 = pneg %p148
        %p363 = pneg %p172
        %p364 = pneg %p169
        %p365 = pneg %p193
        %p366 = pneg %p190
        %p367 = pneg %p214
        %p368 = pneg %p211
        %p369 = pneg %p235
        %p370 = pneg %p232
        %p371 = pneg %p256
        %p372 = pneg %p253
        %p373 = pneg %p282
        %p374 = pneg %p279
        %s375 = sand.u32 %s269, 1
        %s376 = scalar_lea.sflag [#allocation6], %s375
        %s377 = sand.u32 %s269, 1
        %s378 = scalar_lea.vmem [#allocation5], %s377
        %p379 = scmp.lt.s32.totalorder %s25, 1
        %s380 = scalar_select %p379, %s25, 1
        %s381 = smul.addr %s380, 4
        %s382 = smul.addr %s381, 8
        %s383 = scalar_lea.vmem %s0, %s382
        %v385 = vld [vmem:[%s383] sm:$0x7f]
        %vm386 = vcmask 784384
        %387 = vst.msk [vmem:[#allocation2] sm:$0x7f] %vm386, %v385
        %s388 = scalar_lea.vmem %s383, 8
        %v389 = vld [vmem:[%s388] sm:$0x7f]
        %391 = vrot.lane.b32.xlu0 %v389, 96
        %v392 = vpop.permute.xlu0 %391
        %vm394 = vcmask 1047296
        %395 = vst.msk [vmem:[#allocation2] sm:$0x7f] %vm394, %v392
        %vm396 = vcmask 522240
        %397 = vst.msk [vmem:[#allocation2 + $0x8] sm:$0x7f] %vm396, %v392
        %s398 = scalar_lea.vmem %s383, 16
        %v399 = vld [vmem:[%s398] sm:$0x7f]
        %401 = vrot.lane.b32.xlu0 %v399, 64
        %v402 = vpop.permute.xlu0 %401
        %vm404 = vcmask 1047040
        %405 = vst.msk [vmem:[#allocation2 + $0x8] sm:$0x7f] %vm404, %v402
        %vm406 = vcmask 260096
        %407 = vst.msk [vmem:[#allocation2 + $0x10] sm:$0x7f] %vm406, %v402
        %s408 = scalar_lea.vmem %s383, 24
        %v409 = vld [vmem:[%s408] sm:$0x7f]
        %411 = vrot.lane.b32.xlu0 %v409, 32
        %v412 = vpop.permute.xlu0 %411
        %vm414 = vcmask 1046784
        %415 = vst.msk [vmem:[#allocation2 + $0x10] sm:$0x7f] %vm414, %v412
        %v416 = vld [vmem:[%s383 + $0x1] sm:$0x7f]
        %417 = vst.msk [vmem:[#allocation2 + $0x18] sm:$0x7f] %vm386, %v416
        %v418 = vld [vmem:[%s388] sm:$0x7f]
        %v420 = vrot.slane %v418, 1
        %vm422 = vcmask 785415
        %423 = vst.msk [vmem:[#allocation2] sm:$0x80] %vm422, %v420
        %vm424 = vcmask 783360
        %425 = vst.msk [vmem:[#allocation2 + $0x20] sm:$0x3f] %vm424, %v420
        %v426 = vld [vmem:[%s398] sm:$0x7f]
        %v428 = vrot.slane %v426, 1
        %429 = vrot.lane.b32.xlu0 %v428, 96
        %v430 = vpop.permute.xlu0 %429
        %vm432 = vcmask 1048327
        %433 = vst.msk [vmem:[#allocation2] sm:$0x80] %vm432, %v430
        %vm434 = vcmask 523271
        %435 = vst.msk [vmem:[#allocation2 + $0x8] sm:$0x80] %vm434, %v430
        %vm436 = vcmask 1046272
        %437 = vst.msk [vmem:[#allocation2 + $0x20] sm:$0x3f] %vm436, %v430
        %vm438 = vcmask 521216
        %439 = vst.msk [vmem:[#allocation2 + $0x28] sm:$0x3f] %vm438, %v430
        %v440 = vld [vmem:[%s408] sm:$0x7f]
        %v442 = vrot.slane %v440, 1
        %443 = vrot.lane.b32.xlu0 %v442, 64
        %v444 = vpop.permute.xlu0 %443
        %vm446 = vcmask 1048071
        %447 = vst.msk [vmem:[#allocation2 + $0x8] sm:$0x80] %vm446, %v444
        %vm448 = vcmask 261127
        %449 = vst.msk [vmem:[#allocation2 + $0x10] sm:$0x80] %vm448, %v444
        %vm450 = vcmask 1046016
        %451 = vst.msk [vmem:[#allocation2 + $0x28] sm:$0x3f] %vm450, %v444
        %vm452 = vcmask 259072
        %453 = vst.msk [vmem:[#allocation2 + $0x30] sm:$0x3f] %vm452, %v444
        %v454 = vld [vmem:[%s383 + $0x1] sm:$0x7f]
        %v456 = vrot.slane %v454, 1
        %457 = vrot.lane.b32.xlu0 %v456, 32
        %v458 = vpop.permute.xlu0 %457
        %vm460 = vcmask 1047815
        %461 = vst.msk [vmem:[#allocation2 + $0x10] sm:$0x80] %vm460, %v458
        %vm462 = vcmask 1045760
        %463 = vst.msk [vmem:[#allocation2 + $0x30] sm:$0x3f] %vm462, %v458
        %v464 = vld [vmem:[%s388 + $0x1] sm:$0x7f]
        %v466 = vrot.slane %v464, 1
        %468 = vst.msk [vmem:[#allocation2 + $0x18] sm:$0x80] %vm422, %v466
        %469 = vst.msk [vmem:[#allocation2 + $0x38] sm:$0x3f] %vm424, %v466
        %v470 = vld [vmem:[%s398] sm:$0x7f]
        %v472 = vrot.slane %v470, 2
        %vm474 = vcmask 785414
        %475 = vst.msk [vmem:[#allocation2 + $0x20] sm:$0xc0] %vm474, %v472
        %vm476 = vcmask 782336
        %477 = vst.msk [vmem:[#allocation2 + $0x40] sm:$0x1f] %vm476, %v472
        %v478 = vld [vmem:[%s408] sm:$0x7f]
        %v480 = vrot.slane %v478, 2
        %481 = vrot.lane.b32.xlu0 %v480, 96
        %v482 = vpop.permute.xlu0 %481
        %vm484 = vcmask 1048326
        %485 = vst.msk [vmem:[#allocation2 + $0x20] sm:$0xc0] %vm484, %v482
        %vm486 = vcmask 523270
        %487 = vst.msk [vmem:[#allocation2 + $0x28] sm:$0xc0] %vm486, %v482
        %vm488 = vcmask 1045248
        %489 = vst.msk [vmem:[#allocation2 + $0x40] sm:$0x1f] %vm488, %v482
        %vm490 = vcmask 520192
        %491 = vst.msk [vmem:[#allocation2 + $0x48] sm:$0x1f] %vm490, %v482
        %v492 = vld [vmem:[%s383 + $0x1] sm:$0x7f]
        %v494 = vrot.slane %v492, 2
        %495 = vrot.lane.b32.xlu0 %v494, 64
        %v496 = vpop.permute.xlu0 %495
        %vm498 = vcmask 1048070
        %499 = vst.msk [vmem:[#allocation2 + $0x28] sm:$0xc0] %vm498, %v496
        %vm500 = vcmask 261126
        %501 = vst.msk [vmem:[#allocation2 + $0x30] sm:$0xc0] %vm500, %v496
        %vm502 = vcmask 1044992
        %503 = vst.msk [vmem:[#allocation2 + $0x48] sm:$0x1f] %vm502, %v496
        %vm504 = vcmask 258048
        %505 = vst.msk [vmem:[#allocation2 + $0x50] sm:$0x1f] %vm504, %v496
        %v506 = vld [vmem:[%s388 + $0x1] sm:$0x7f]
        %v508 = vrot.slane %v506, 2
        %509 = vrot.lane.b32.xlu0 %v508, 32
        %v510 = vpop.permute.xlu0 %509
        %vm512 = vcmask 1047814
        %513 = vst.msk [vmem:[#allocation2 + $0x30] sm:$0xc0] %vm512, %v510
        %vm514 = vcmask 1044736
        %515 = vst.msk [vmem:[#allocation2 + $0x50] sm:$0x1f] %vm514, %v510
        %v516 = vld [vmem:[%s398 + $0x1] sm:$0x7f]
        %v518 = vrot.slane %v516, 2
        %520 = vst.msk [vmem:[#allocation2 + $0x38] sm:$0xc0] %vm474, %v518
        %521 = vst.msk [vmem:[#allocation2 + $0x58] sm:$0x1f] %vm476, %v518
        %v522 = vld [vmem:[%s408] sm:$0x7f]
        %v524 = vrot.slane %v522, 3
        %vm526 = vcmask 785413
        %527 = vst.msk [vmem:[#allocation2 + $0x40] sm:$0xe0] %vm526, %v524
        %vm528 = vcmask 781312
        %529 = vst.msk [vmem:[#allocation2 + $0x60] sm:$0xf] %vm528, %v524
        %v530 = vld [vmem:[%s383 + $0x1] sm:$0x7f]
        %v532 = vrot.slane %v530, 3
        %533 = vrot.lane.b32.xlu0 %v532, 96
        %v534 = vpop.permute.xlu0 %533
        %vm536 = vcmask 1048325
        %537 = vst.msk [vmem:[#allocation2 + $0x40] sm:$0xe0] %vm536, %v534
        %vm538 = vcmask 523269
        %539 = vst.msk [vmem:[#allocation2 + $0x48] sm:$0xe0] %vm538, %v534
        %vm540 = vcmask 1044224
        %541 = vst.msk [vmem:[#allocation2 + $0x60] sm:$0xf] %vm540, %v534
        %vm542 = vcmask 519168
        %543 = vst.msk [vmem:[#allocation2 + $0x68] sm:$0xf] %vm542, %v534
        %v544 = vld [vmem:[%s388 + $0x1] sm:$0x7f]
        %v546 = vrot.slane %v544, 3
        %547 = vrot.lane.b32.xlu0 %v546, 64
        %v548 = vpop.permute.xlu0 %547
        %vm550 = vcmask 1048069
        %551 = vst.msk [vmem:[#allocation2 + $0x48] sm:$0xe0] %vm550, %v548
        %vm552 = vcmask 261125
        %553 = vst.msk [vmem:[#allocation2 + $0x50] sm:$0xe0] %vm552, %v548
        %vm554 = vcmask 1043968
        %555 = vst.msk [vmem:[#allocation2 + $0x68] sm:$0xf] %vm554, %v548
        %vm556 = vcmask 257024
        %557 = vst.msk [vmem:[#allocation2 + $0x70] sm:$0xf] %vm556, %v548
        %v558 = vld [vmem:[%s398 + $0x1] sm:$0x7f]
        %v560 = vrot.slane %v558, 3
        %561 = vrot.lane.b32.xlu0 %v560, 32
        %v562 = vpop.permute.xlu0 %561
        %vm564 = vcmask 1047813
        %565 = vst.msk [vmem:[#allocation2 + $0x50] sm:$0xe0] %vm564, %v562
        %vm566 = vcmask 1043712
        %567 = vst.msk [vmem:[#allocation2 + $0x70] sm:$0xf] %vm566, %v562
        %v568 = vld [vmem:[%s408 + $0x1] sm:$0x7f]
        %v570 = vrot.slane %v568, 3
        %572 = vst.msk [vmem:[#allocation2 + $0x58] sm:$0xe0] %vm526, %v570
        %573 = vst.msk [vmem:[#allocation2 + $0x78] sm:$0xf] %vm528, %v570
        %v574 = vld [vmem:[#allocation2] sm:$0xff]
        %v575 = vld [vmem:[#allocation2 + $0x8] sm:$0xff]
        %v576 = vld [vmem:[#allocation2 + $0x10] sm:$0xff]
        %v577 = vld [vmem:[#allocation2 + $0x18] sm:$0xff]
        %v578 = vld [vmem:[#allocation2 + $0x20] sm:$0xff]
        %v579 = vld [vmem:[#allocation2 + $0x28] sm:$0xff]
        %v580 = vld [vmem:[#allocation2 + $0x30] sm:$0xff]
        %v581 = vld [vmem:[#allocation2 + $0x38] sm:$0xff]
        %v582 = vld [vmem:[#allocation2 + $0x40] sm:$0xff]
        %v583 = vld [vmem:[#allocation2 + $0x48] sm:$0xff]
        %v584 = vld [vmem:[#allocation2 + $0x50] sm:$0xff]
        %v585 = vld [vmem:[#allocation2 + $0x58] sm:$0xff]
        %v586 = vld [vmem:[#allocation2 + $0x60] sm:$0xf]
        %v587 = vld [vmem:[#allocation2 + $0x68] sm:$0xf]
        %v588 = vld [vmem:[#allocation2 + $0x70] sm:$0xf]
        %v589 = vld [vmem:[#allocation2 + $0x78] sm:$0xf]
        %v590 = vpack.c.bf16 %v578, %v574
        %v591 = vpack.c.bf16 %v579, %v575
        %v592 = vpack.c.bf16 %v580, %v576
        %v593 = vpack.c.bf16 %v581, %v577
        %v594 = vpack.c.bf16 %v586, %v582
        %v595 = vpack.c.bf16 %v587, %v583
        %v596 = vpack.c.bf16 %v588, %v584
        %v597 = vpack.c.bf16 %v589, %v585
        %v598 = vld [vmem:[%s1] sm:$0xff]
        %v599 = vld [vmem:[%s1 + $0x8] sm:$0xff]
        %v600 = vld [vmem:[%s1 + $0x10] sm:$0xff]
        %v601 = vld [vmem:[%s1 + $0x18] sm:$0xff]
        %v602 = vld [vmem:[%s1 + $0x20] sm:$0xff]
        %v603 = vld [vmem:[%s1 + $0x28] sm:$0xff]
        %v604 = vld [vmem:[%s1 + $0x30] sm:$0xff]
        %v605 = vld [vmem:[%s1 + $0x38] sm:$0xff]
        %v606 = vld [vmem:[%s1 + $0x40] sm:$0xff]
        %v607 = vld [vmem:[%s1 + $0x48] sm:$0xff]
        %v608 = vld [vmem:[%s1 + $0x50] sm:$0xff]
        %v609 = vld [vmem:[%s1 + $0x58] sm:$0xff]
        %v610 = vld [vmem:[%s1 + $0x60] sm:$0xff]
        %v611 = vld [vmem:[%s1 + $0x68] sm:$0xff]
        %v612 = vld [vmem:[%s1 + $0x70] sm:$0xff]
        %v613 = vld [vmem:[%s1 + $0x78] sm:$0xff]
        %v614 = vld [vmem:[%s1 + $0x80] sm:$0xff]
        %v615 = vld [vmem:[%s1 + $0x88] sm:$0xff]
        %v616 = vld [vmem:[%s1 + $0x90] sm:$0xff]
        %v617 = vld [vmem:[%s1 + $0x98] sm:$0xff]
        %v618 = vld [vmem:[%s1 + $0xa0] sm:$0xff]
        %v619 = vld [vmem:[%s1 + $0xa8] sm:$0xff]
        %v620 = vld [vmem:[%s1 + $0xb0] sm:$0xff]
        %v621 = vld [vmem:[%s1 + $0xb8] sm:$0xff]
        %v622 = vld [vmem:[%s1 + $0xc0] sm:$0xff]
        %v623 = vld [vmem:[%s1 + $0xc8] sm:$0xff]
        %v624 = vld [vmem:[%s1 + $0xd0] sm:$0xff]
        %v625 = vld [vmem:[%s1 + $0xd8] sm:$0xff]
        %v626 = vld [vmem:[%s1 + $0xe0] sm:$0xff]
        %v627 = vld [vmem:[%s1 + $0xe8] sm:$0xff]
        %v628 = vld [vmem:[%s1 + $0xf0] sm:$0xff]
        %v629 = vld [vmem:[%s1 + $0xf8] sm:$0xff]
        %v630 = vld [vmem:[%s1 + $0x100] sm:$0xff]
        %v631 = vld [vmem:[%s1 + $0x108] sm:$0xff]
        %v632 = vld [vmem:[%s1 + $0x110] sm:$0xff]
        %v633 = vld [vmem:[%s1 + $0x118] sm:$0xff]
        %v634 = vld [vmem:[%s1 + $0x120] sm:$0xff]
        %v635 = vld [vmem:[%s1 + $0x128] sm:$0xff]
        %v636 = vld [vmem:[%s1 + $0x130] sm:$0xff]
        %v637 = vld [vmem:[%s1 + $0x138] sm:$0xff]
        %v638 = vld [vmem:[%s1 + $0x140] sm:$0xff]
        %v639 = vld [vmem:[%s1 + $0x148] sm:$0xff]
        %v640 = vld [vmem:[%s1 + $0x150] sm:$0xff]
        %v641 = vld [vmem:[%s1 + $0x158] sm:$0xff]
        %v642 = vld [vmem:[%s1 + $0x160] sm:$0xff]
        %v643 = vld [vmem:[%s1 + $0x168] sm:$0xff]
        %v644 = vld [vmem:[%s1 + $0x170] sm:$0xff]
        %v645 = vld [vmem:[%s1 + $0x178] sm:$0xff]
        %v646 = vld [vmem:[%s1 + $0x180] sm:$0xff]
        %v647 = vld [vmem:[%s1 + $0x188] sm:$0xff]
        %v648 = vld [vmem:[%s1 + $0x190] sm:$0xff]
        %v649 = vld [vmem:[%s1 + $0x198] sm:$0xff]
        %v650 = vld [vmem:[%s1 + $0x1a0] sm:$0xff]
        %v651 = vld [vmem:[%s1 + $0x1a8] sm:$0xff]
        %v652 = vld [vmem:[%s1 + $0x1b0] sm:$0xff]
        %v653 = vld [vmem:[%s1 + $0x1b8] sm:$0xff]
        %v654 = vld [vmem:[%s1 + $0x1c0] sm:$0xff]
        %v655 = vld [vmem:[%s1 + $0x1c8] sm:$0xff]
        %v656 = vld [vmem:[%s1 + $0x1d0] sm:$0xff]
        %v657 = vld [vmem:[%s1 + $0x1d8] sm:$0xff]
        %v718 = vunpack.c.l.b16 %v598
        %v719 = vunpack.c.h.b16 %v598
        %v720 = vunpack.c.l.b16 %v599
        %v721 = vunpack.c.h.b16 %v599
        %v722 = vunpack.c.l.b16 %v600
        %v723 = vunpack.c.h.b16 %v600
        %v724 = vunpack.c.l.b16 %v601
        %v725 = vunpack.c.h.b16 %v601
        %v726 = vunpack.c.l.b16 %v602
        %v727 = vunpack.c.h.b16 %v602
        %v728 = vunpack.c.l.b16 %v603
        %v729 = vunpack.c.h.b16 %v603
        %v730 = vunpack.c.l.b16 %v604
        %v731 = vunpack.c.h.b16 %v604
        %v732 = vunpack.c.l.b16 %v605
        %v733 = vunpack.c.h.b16 %v605
        %v734 = vunpack.c.l.b16 %v606
        %v735 = vunpack.c.h.b16 %v606
        %v736 = vunpack.c.l.b16 %v607
        %v737 = vunpack.c.h.b16 %v607
        %v738 = vunpack.c.l.b16 %v608
        %v739 = vunpack.c.h.b16 %v608
        %v740 = vunpack.c.l.b16 %v609
        %v741 = vunpack.c.h.b16 %v609
        %v742 = vunpack.c.l.b16 %v610
        %v743 = vunpack.c.h.b16 %v610
        %v744 = vunpack.c.l.b16 %v611
        %v745 = vunpack.c.h.b16 %v611
        %v746 = vunpack.c.l.b16 %v612
        %v747 = vunpack.c.h.b16 %v612
        %v748 = vunpack.c.l.b16 %v613
        %v749 = vunpack.c.h.b16 %v613
        %v750 = vunpack.c.l.b16 %v614
        %v751 = vunpack.c.h.b16 %v614
        %v752 = vunpack.c.l.b16 %v615
        %v753 = vunpack.c.h.b16 %v615
        %v754 = vunpack.c.l.b16 %v616
        %v755 = vunpack.c.h.b16 %v616
        %v756 = vunpack.c.l.b16 %v617
        %v757 = vunpack.c.h.b16 %v617
        %v758 = vunpack.c.l.b16 %v618
        %v759 = vunpack.c.h.b16 %v618
        %v760 = vunpack.c.l.b16 %v619
        %v761 = vunpack.c.h.b16 %v619
        %v762 = vunpack.c.l.b16 %v620
        %v763 = vunpack.c.h.b16 %v620
        %v764 = vunpack.c.l.b16 %v621
        %v765 = vunpack.c.h.b16 %v621
        %v766 = vunpack.c.l.b16 %v622
        %v767 = vunpack.c.h.b16 %v622
        %v768 = vunpack.c.l.b16 %v623
        %v769 = vunpack.c.h.b16 %v623
        %v770 = vunpack.c.l.b16 %v624
        %v771 = vunpack.c.h.b16 %v624
        %v772 = vunpack.c.l.b16 %v625
        %v773 = vunpack.c.h.b16 %v625
        %v774 = vunpack.c.l.b16 %v626
        %v775 = vunpack.c.h.b16 %v626
        %v776 = vunpack.c.l.b16 %v627
        %v777 = vunpack.c.h.b16 %v627
        %v778 = vunpack.c.l.b16 %v628
        %v779 = vunpack.c.h.b16 %v628
        %v780 = vunpack.c.l.b16 %v629
        %v781 = vunpack.c.h.b16 %v629
        %v782 = vunpack.c.l.b16 %v630
        %v783 = vunpack.c.h.b16 %v630
        %v784 = vunpack.c.l.b16 %v631
        %v785 = vunpack.c.h.b16 %v631
        %v786 = vunpack.c.l.b16 %v632
        %v787 = vunpack.c.h.b16 %v632
        %v788 = vunpack.c.l.b16 %v633
        %v789 = vunpack.c.h.b16 %v633
        %v790 = vunpack.c.l.b16 %v634
        %v791 = vunpack.c.h.b16 %v634
        %v792 = vunpack.c.l.b16 %v635
        %v793 = vunpack.c.h.b16 %v635
        %v794 = vunpack.c.l.b16 %v636
        %v795 = vunpack.c.h.b16 %v636
        %v796 = vunpack.c.l.b16 %v637
        %v797 = vunpack.c.h.b16 %v637
        %v798 = vunpack.c.l.b16 %v638
        %v799 = vunpack.c.h.b16 %v638
        %v800 = vunpack.c.l.b16 %v639
        %v801 = vunpack.c.h.b16 %v639
        %v802 = vunpack.c.l.b16 %v640
        %v803 = vunpack.c.h.b16 %v640
        %v804 = vunpack.c.l.b16 %v641
        %v805 = vunpack.c.h.b16 %v641
        %v806 = vunpack.c.l.b16 %v642
        %v807 = vunpack.c.h.b16 %v642
        %v808 = vunpack.c.l.b16 %v643
        %v809 = vunpack.c.h.b16 %v643
        %v810 = vunpack.c.l.b16 %v644
        %v811 = vunpack.c.h.b16 %v644
        %v812 = vunpack.c.l.b16 %v645
        %v813 = vunpack.c.h.b16 %v645
        %v814 = vunpack.c.l.b16 %v646
        %v815 = vunpack.c.h.b16 %v646
        %v816 = vunpack.c.l.b16 %v647
        %v817 = vunpack.c.h.b16 %v647
        %v818 = vunpack.c.l.b16 %v648
        %v819 = vunpack.c.h.b16 %v648
        %v820 = vunpack.c.l.b16 %v649
        %v821 = vunpack.c.h.b16 %v649
        %v822 = vunpack.c.l.b16 %v650
        %v823 = vunpack.c.h.b16 %v650
        %v824 = vunpack.c.l.b16 %v651
        %v825 = vunpack.c.h.b16 %v651
        %v826 = vunpack.c.l.b16 %v652
        %v827 = vunpack.c.h.b16 %v652
        %v828 = vunpack.c.l.b16 %v653
        %v829 = vunpack.c.h.b16 %v653
        %v830 = vunpack.c.l.b16 %v654
        %v831 = vunpack.c.h.b16 %v654
        %v832 = vunpack.c.l.b16 %v655
        %v833 = vunpack.c.h.b16 %v655
        %v834 = vunpack.c.l.b16 %v656
        %v835 = vunpack.c.h.b16 %v656
        %v836 = vunpack.c.l.b16 %v657
        %v837 = vunpack.c.h.b16 %v657
        %v838 = vpack.c.b16 %v720, %v718
        %v839 = vpack.c.b16 %v721, %v719
        %v840 = vpack.c.b16 %v724, %v722
        %v841 = vpack.c.b16 %v725, %v723
        %v842 = vpack.c.b16 %v728, %v726
        %v843 = vpack.c.b16 %v729, %v727
        %v844 = vpack.c.b16 %v732, %v730
        %v845 = vpack.c.b16 %v733, %v731
        %v846 = vpack.c.b16 %v736, %v734
        %v847 = vpack.c.b16 %v737, %v735
        %v848 = vpack.c.b16 %v740, %v738
        %v849 = vpack.c.b16 %v741, %v739
        %v850 = vpack.c.b16 %v744, %v742
        %v851 = vpack.c.b16 %v745, %v743
        %v852 = vpack.c.b16 %v748, %v746
        %v853 = vpack.c.b16 %v749, %v747
        %v854 = vpack.c.b16 %v752, %v750
        %v855 = vpack.c.b16 %v753, %v751
        %v856 = vpack.c.b16 %v756, %v754
        %v857 = vpack.c.b16 %v757, %v755
        %v858 = vpack.c.b16 %v760, %v758
        %v859 = vpack.c.b16 %v761, %v759
        %v860 = vpack.c.b16 %v764, %v762
        %v861 = vpack.c.b16 %v765, %v763
        %v862 = vpack.c.b16 %v768, %v766
        %v863 = vpack.c.b16 %v769, %v767
        %v864 = vpack.c.b16 %v772, %v770
        %v865 = vpack.c.b16 %v773, %v771
        %v866 = vpack.c.b16 %v776, %v774
        %v867 = vpack.c.b16 %v777, %v775
        %v868 = vpack.c.b16 %v780, %v778
        %v869 = vpack.c.b16 %v781, %v779
        %v870 = vpack.c.b16 %v784, %v782
        %v871 = vpack.c.b16 %v785, %v783
        %v872 = vpack.c.b16 %v788, %v786
        %v873 = vpack.c.b16 %v789, %v787
        %v874 = vpack.c.b16 %v792, %v790
        %v875 = vpack.c.b16 %v793, %v791
        %v876 = vpack.c.b16 %v796, %v794
        %v877 = vpack.c.b16 %v797, %v795
        %v878 = vpack.c.b16 %v800, %v798
        %v879 = vpack.c.b16 %v801, %v799
        %v880 = vpack.c.b16 %v804, %v802
        %v881 = vpack.c.b16 %v805, %v803
        %v882 = vpack.c.b16 %v808, %v806
        %v883 = vpack.c.b16 %v809, %v807
        %v884 = vpack.c.b16 %v812, %v810
        %v885 = vpack.c.b16 %v813, %v811
        %v886 = vpack.c.b16 %v816, %v814
        %v887 = vpack.c.b16 %v817, %v815
        %v888 = vpack.c.b16 %v820, %v818
        %v889 = vpack.c.b16 %v821, %v819
        %v890 = vpack.c.b16 %v824, %v822
        %v891 = vpack.c.b16 %v825, %v823
        %v892 = vpack.c.b16 %v828, %v826
        %v893 = vpack.c.b16 %v829, %v827
        %v894 = vpack.c.b16 %v832, %v830
        %v895 = vpack.c.b16 %v833, %v831
        %v896 = vpack.c.b16 %v836, %v834
        %v897 = vpack.c.b16 %v837, %v835
        %vm958 = vcmask 785408
        %v960 = vsel %vm958, %v593, 0
        %v963 = vsel %vm958, %v597, 0
        %965 = vmatprep.subr.bf16.mxu0 %v853
        %966 = vmatpush1.bf16.msra.mxu0 %v852
        %967 = vmatprep.subr.bf16.mxu0 %v851
        %968 = vmatpush1.bf16.msra.mxu0 %v850
        %969 = vmatprep.subr.bf16.mxu0 %v849
        %970 = vmatpush1.bf16.msra.mxu0 %v848
        %971 = vmatprep.subr.bf16.mxu0 %v847
        %972 = vmatpush1.bf16.msra.mxu0 %v846
        %973 = vmatprep.subr.bf16.mxu0 %v845
        %974 = vmatpush1.bf16.msra.mxu0 %v844
        %975 = vmatprep.subr.bf16.mxu0 %v843
        %976 = vmatpush1.bf16.msra.mxu0 %v842
        %977 = vmatprep.subr.bf16.mxu0 %v841
        %978 = vmatpush1.bf16.msra.mxu0 %v840
        %979 = vmatprep.subr.bf16.mxu0 %v839
        %980 = vmatpush1.bf16.msra.mxu0 %v838
        %981 = vmatprep.subr.bf16.mxu0 %v869
        %982 = vmatpush2.bf16.msra.mxu0 %v868
        %983 = vmatprep.subr.bf16.mxu0 %v867
        %984 = vmatpush2.bf16.msra.mxu0 %v866
        %985 = vmatprep.subr.bf16.mxu0 %v865
        %986 = vmatpush2.bf16.msra.mxu0 %v864
        %987 = vmatprep.subr.bf16.mxu0 %v863
        %988 = vmatpush2.bf16.msra.mxu0 %v862
        %989 = vmatprep.subr.bf16.mxu0 %v861
        %990 = vmatpush2.bf16.msra.mxu0 %v860
        %991 = vmatprep.subr.bf16.mxu0 %v859
        %992 = vmatpush2.bf16.msra.mxu0 %v858
        %993 = vmatprep.subr.bf16.mxu0 %v857
        %994 = vmatpush2.bf16.msra.mxu0 %v856
        %995 = vmatprep.subr.bf16.mxu0 %v855
        %996 = vmatpush2.bf16.msra.mxu0 %v854
        %997 = vmatprep.mubr.bf16.mxu0 %v591
        %998 = vmatmul.mubr.bf16.gmra.mxu0 %v590
        %v999 = vpop.f32.mrf.mxu0
        %v1000 = vadd.f32 0.0, %v999
        %v1001 = vpop.f32.mrf.mxu0
        %v1002 = vadd.f32 0.0, %v1001
        %v1003 = vpop.f32.mrf.mxu0
        %v1004 = vadd.f32 0.0, %v1003
        %v1005 = vpop.f32.mrf.mxu0
        %v1006 = vadd.f32 0.0, %v1005
        %1007 = vmatprep.mubr.bf16.mxu0 %v595
        %1008 = vmatmul.mubr.bf16.gmra.mxu0 %v594
        %v1009 = vpop.f32.mrf.mxu0
        %v1010 = vadd.f32 0.0, %v1009
        %v1011 = vpop.f32.mrf.mxu0
        %v1012 = vadd.f32 0.0, %v1011
        %v1013 = vpop.f32.mrf.mxu0
        %v1014 = vadd.f32 0.0, %v1013
        %v1015 = vpop.f32.mrf.mxu0
        %v1016 = vadd.f32 0.0, %v1015
        %1017 = vdwg.mxu0
        %1018 = vmatprep.subr.bf16.mxu0 %v885
        %1019 = vmatpush1.bf16.msra.mxu0 %v884
        %1020 = vmatprep.subr.bf16.mxu0 %v883
        %1021 = vmatpush1.bf16.msra.mxu0 %v882
        %1022 = vmatprep.subr.bf16.mxu0 %v881
        %1023 = vmatpush1.bf16.msra.mxu0 %v880
        %1024 = vmatprep.subr.bf16.mxu0 %v879
        %1025 = vmatpush1.bf16.msra.mxu0 %v878
        %1026 = vmatprep.subr.bf16.mxu0 %v877
        %1027 = vmatpush1.bf16.msra.mxu0 %v876
        %1028 = vmatprep.subr.bf16.mxu0 %v875
        %1029 = vmatpush1.bf16.msra.mxu0 %v874
        %1030 = vmatprep.subr.bf16.mxu0 %v873
        %1031 = vmatpush1.bf16.msra.mxu0 %v872
        %1032 = vmatprep.subr.bf16.mxu0 %v871
        %1033 = vmatpush1.bf16.msra.mxu0 %v870
        %1034 = vmatprep.subr.bf16.mxu0 0
        %1035 = vmatpush2.bf16.msra.mxu0 0
        %1036 = vmatprep.subr.bf16.mxu0 0
        %1037 = vmatpush2.bf16.msra.mxu0 0
        %1038 = vmatprep.subr.bf16.mxu0 %v897
        %1039 = vmatpush2.bf16.msra.mxu0 %v896
        %1040 = vmatprep.subr.bf16.mxu0 %v895
        %1041 = vmatpush2.bf16.msra.mxu0 %v894
        %1042 = vmatprep.subr.bf16.mxu0 %v893
        %1043 = vmatpush2.bf16.msra.mxu0 %v892
        %1044 = vmatprep.subr.bf16.mxu0 %v891
        %1045 = vmatpush2.bf16.msra.mxu0 %v890
        %1046 = vmatprep.subr.bf16.mxu0 %v889
        %1047 = vmatpush2.bf16.msra.mxu0 %v888
        %1048 = vmatprep.subr.bf16.mxu0 %v887
        %1049 = vmatpush2.bf16.msra.mxu0 %v886
        %1050 = vmatprep.mubr.bf16.mxu0 %v960
        %1051 = vmatmul.mubr.bf16.gmra.mxu0 %v592
        %v1052 = vpop.f32.mrf.mxu0
        %v1053 = vadd.f32 %v1000, %v1052
        %v1054 = vpop.f32.mrf.mxu0
        %v1055 = vadd.f32 %v1002, %v1054
        %v1056 = vpop.f32.mrf.mxu0
        %v1057 = vadd.f32 %v1004, %v1056
        %v1058 = vpop.f32.mrf.mxu0
        %v1059 = vadd.f32 %v1006, %v1058
        %1060 = vmatprep.mubr.bf16.mxu0 %v963
        %1061 = vmatmul.mubr.bf16.gmra.mxu0 %v596
        %v1062 = vpop.f32.mrf.mxu0
        %v1063 = vadd.f32 %v1010, %v1062
        %v1064 = vpop.f32.mrf.mxu0
        %v1065 = vadd.f32 %v1012, %v1064
        %v1066 = vpop.f32.mrf.mxu0
        %v1067 = vadd.f32 %v1014, %v1066
        %v1068 = vpop.f32.mrf.mxu0
        %v1069 = vadd.f32 %v1016, %v1068
        %1070 = vdwg.mxu0
        %vm1075 = vcmask 1040384
        %v1076 = vrot.slane %v1053, 7
        %v1077 = vrot.slane %v1057, 7
        %v1078 = vsel %vm1075, %v1076, %v1077
        %v1079 = vrot.slane %v1055, 7
        %v1080 = vrot.slane %v1059, 7
        %v1081 = vsel %vm1075, %v1079, %v1080
        %v1084 = vmax.f32 %v1053, %v1078
        %v1085 = vmax.f32 %v1055, %v1081
        %v1090 = vrot.slane %v1063, 7
        %v1091 = vrot.slane %v1065, 7
        %v1092 = vrot.slane %v1067, 7
        %v1093 = vsel %vm1075, %v1090, %v1092
        %v1094 = vrot.slane %v1069, 7
        %v1095 = vsel %vm1075, %v1091, %v1094
        %v1100 = vmax.f32 %v1057, %v1090
        %v1101 = vmax.f32 %v1059, %v1091
        %v1102 = vmax.f32 %v1063, %v1093
        %v1103 = vmax.f32 %v1065, %v1095
        %v1104 = vld [vmem:[%s2] sm:$0x1]
        %1107 = vrot.lane.b32.xlu0 %v1084, 44
        %v1108 = vpop.permute.xlu0 %1107
        %1109 = vrot.lane.b32.xlu0 %v1085, 44
        %v1110 = vpop.permute.xlu0 %1109
        %vm1111 = vcmask 359424
        %v1112 = vsel %vm1111, %v1108, %v1110
        %v1114 = vmax.f32 %v1084, %v1112
        %v1116 = vlaneseq
        %v1117 = vshrl.u32 %v1116, 7
        %v1118 = vsub.s32 0, %v1117
        %v1119 = vrot.slane %v1104, %v1118
        %v1121 = vadd.f32 %v1114, %v1119
        %v1122 = vmax.f32 %v1121, 0.0
        %1127 = vrot.lane.b32.xlu0 %v1100, 44
        %v1128 = vpop.permute.xlu0 %1127
        %1129 = vrot.lane.b32.xlu0 %v1101, 44
        %v1130 = vpop.permute.xlu0 %1129
        %1131 = vrot.lane.b32.xlu0 %v1102, 44
        %v1132 = vpop.permute.xlu0 %1131
        %1133 = vrot.lane.b32.xlu0 %v1103, 44
        %v1134 = vpop.permute.xlu0 %1133
        %v1135 = vsel %vm1111, %v1128, %v1130
        %v1136 = vsel %vm1111, %v1132, %v1134
        %v1139 = vmax.f32 %v1100, %v1135
        %v1140 = vmax.f32 %v1102, %v1136
        %v1141 = vadd.f32 %v1139, %v1119
        %v1142 = vadd.f32 %v1140, %v1119
        %v1143 = vmax.f32 %v1141, 0.0
        %v1144 = vmax.f32 %v1142, 0.0
        %vm1145 = vcmask 684032
        %1146 = vst.msk [vmem:[#allocation3] sm:$0x1f] %vm1145, %v1122
        %vm1149 = vcmask 1041408
        %v1150 = vrot.slane %v1143, 6
        %v1151 = vrot.slane %v1144, 6
        %v1152 = vsel %vm1149, %v1150, %v1151
        %1153 = vrot.lane.b32.xlu0 %v1152, 84
        %v1154 = vpop.permute.xlu0 %1153
        %vm1156 = vcmask 1045152
        %1157 = vst.msk [vmem:[#allocation3] sm:$0x1f] %vm1156, %v1154
        %vm1158 = vcmask 323584
        %1159 = vst.msk [vmem:[#allocation3 + $0x8] sm:$0x1f] %vm1158, %v1154
        %v1161 = vrot.slane %v1122, 1
        %1162 = vrot.lane.b32.xlu0 %v1161, 40
        %v1163 = vpop.permute.xlu0 %1162
        %vm1165 = vcmask 1012032
        %1166 = vst.msk [vmem:[#allocation3 + $0x8] sm:$0x1f] %vm1165, %v1163
        %v1167 = vrot.slane %v1143, 7
        %v1168 = vrot.slane %v1144, 7
        %v1169 = vsel %vm1075, %v1167, %v1168
        %1170 = vrot.lane.b32.xlu0 %v1169, 124
        %v1171 = vpop.permute.xlu0 %1170
        %vm1173 = vcmask 1045472
        %1174 = vst.msk [vmem:[#allocation3 + $0x8] sm:$0x1f] %vm1173, %v1171
        %vm1175 = vcmask 651264
        %1176 = vst.msk [vmem:[#allocation3 + $0x10] sm:$0x1f] %vm1175, %v1171
        %v1177 = vrot.slane %v1122, 2
        %1178 = vrot.lane.b32.xlu0 %v1177, 80
        %v1179 = vpop.permute.xlu0 %1178
        %vm1181 = vcmask 1045120
        %1182 = vst.msk [vmem:[#allocation3 + $0x10] sm:$0x1f] %vm1181, %v1179
        %vm1183 = vcmask 290816
        %1184 = vst.msk [vmem:[#allocation3 + $0x18] sm:$0x1f] %vm1183, %v1179
        %vm1185 = vcmask 1046528
        %v1186 = vrot.slane %v1143, 1
        %v1187 = vrot.slane %v1144, 1
        %v1188 = vsel %vm1185, %v1186, %v1187
        %vm1191 = vcmask 687109
        %1192 = vst.msk [vmem:[#allocation3] sm:$0xe0] %vm1191, %v1188
        %vm1193 = vcmask 680960
        %1194 = vst.msk [vmem:[#allocation3 + $0x20] sm:$0x3] %vm1193, %v1187
        %v1195 = vrot.slane %v1122, 4
        %1196 = vrot.lane.b32.xlu0 %v1195, 84
        %v1197 = vpop.permute.xlu0 %1196
        %vm1199 = vcmask 1048229
        %1200 = vst.msk [vmem:[#allocation3] sm:$0xe0] %vm1199, %v1197
        %vm1201 = vcmask 326661
        %1202 = vst.msk [vmem:[#allocation3 + $0x8] sm:$0xe0] %vm1201, %v1197
        %vm1203 = vcmask 1042080
        %1204 = vst.msk [vmem:[#allocation3 + $0x20] sm:$0x3] %vm1203, %v1197
        %vm1205 = vcmask 320512
        %1206 = vst.msk [vmem:[#allocation3 + $0x28] sm:$0x3] %vm1205, %v1197
        %vm1207 = vcmask 1045504
        %v1208 = vrot.slane %v1143, 2
        %v1209 = vrot.slane %v1144, 2
        %v1210 = vsel %vm1207, %v1208, %v1209
        %1211 = vrot.lane.b32.xlu0 %v1210, 40
        %v1212 = vpop.permute.xlu0 %1211
        %1213 = vrot.lane.b32.xlu0 %v1209, 40
        %v1214 = vpop.permute.xlu0 %1213
        %vm1217 = vcmask 1015109
        %1218 = vst.msk [vmem:[#allocation3 + $0x8] sm:$0xe0] %vm1217, %v1212
        %vm1219 = vcmask 1008960
        %1220 = vst.msk [vmem:[#allocation3 + $0x28] sm:$0x3] %vm1219, %v1214
        %v1221 = vrot.slane %v1122, 5
        %1222 = vrot.lane.b32.xlu0 %v1221, 124
        %v1223 = vpop.permute.xlu0 %1222
        %vm1225 = vcmask 1048549
        %1226 = vst.msk [vmem:[#allocation3 + $0x8] sm:$0xe0] %vm1225, %v1223
        %vm1227 = vcmask 654341
        %1228 = vst.msk [vmem:[#allocation3 + $0x10] sm:$0xe0] %vm1227, %v1223
        %vm1229 = vcmask 1042400
        %1230 = vst.msk [vmem:[#allocation3 + $0x28] sm:$0x3] %vm1229, %v1223
        %vm1231 = vcmask 648192
        %1232 = vst.msk [vmem:[#allocation3 + $0x30] sm:$0x3] %vm1231, %v1223
        %v1233 = vrot.slane %v1144, 3
        %1234 = vrot.lane.b32.xlu0 %v1233, 80
        %v1235 = vpop.permute.xlu0 %1234
        %vm1237 = vcmask 1048197
        %1238 = vst.msk [vmem:[#allocation3 + $0x10] sm:$0xe0] %vm1237, %v1235
        %vm1239 = vcmask 293893
        %1240 = vst.msk [vmem:[#allocation3 + $0x18] sm:$0xe0] %vm1239, %v1235
        %vm1241 = vcmask 1042048
        %1242 = vst.msk [vmem:[#allocation3 + $0x30] sm:$0x3] %vm1241, %v1235
        %vm1243 = vcmask 287744
        %1244 = vst.msk [vmem:[#allocation3 + $0x38] sm:$0x3] %vm1243, %v1235
        %v1245 = vld [vmem:[#allocation3] sm:$0xff]
        %v1246 = vld [vmem:[#allocation3 + $0x8] sm:$0xff]
        %v1247 = vld [vmem:[#allocation3 + $0x10] sm:$0xff]
        %v1248 = vld [vmem:[#allocation3 + $0x18] sm:$0xff]
        %v1249 = vld [vmem:[#allocation3 + $0x20] sm:$0x3]
        %v1250 = vld [vmem:[#allocation3 + $0x28] sm:$0x3]
        %v1251 = vld [vmem:[#allocation3 + $0x30] sm:$0x3]
        %v1252 = vld [vmem:[#allocation3 + $0x38] sm:$0x3]
        %v1253 = vpack.c.bf16 %v1249, %v1245
        %v1254 = vpack.c.bf16 %v1250, %v1246
        %v1255 = vpack.c.bf16 %v1251, %v1247
        %v1256 = vpack.c.bf16 %v1252, %v1248
        %v1257 = vld [vmem:[%s3] sm:$0xff]
        %v1258 = vld [vmem:[%s3 + $0x8] sm:$0xff]
        %v1259 = vld [vmem:[%s3 + $0x10] sm:$0xff]
        %v1260 = vld [vmem:[%s3 + $0x18] sm:$0xff]
        %v1261 = vld [vmem:[%s3 + $0x20] sm:$0xff]
        %v1262 = vld [vmem:[%s3 + $0x28] sm:$0xff]
        %v1263 = vld [vmem:[%s3 + $0x30] sm:$0xff]
        %v1264 = vld [vmem:[%s3 + $0x38] sm:$0xff]
        %v1265 = vld [vmem:[%s3 + $0x40] sm:$0xff]
        %v1266 = vld [vmem:[%s3 + $0x48] sm:$0xff]
        %v1267 = vld [vmem:[%s3 + $0x50] sm:$0xff]
        %v1268 = vld [vmem:[%s3 + $0x58] sm:$0xff]
        %v1269 = vld [vmem:[%s3 + $0x60] sm:$0xff]
        %v1270 = vld [vmem:[%s3 + $0x68] sm:$0xff]
        %v1271 = vld [vmem:[%s3 + $0x70] sm:$0xff]
        %v1272 = vld [vmem:[%s3 + $0x78] sm:$0xff]
        %v1273 = vld [vmem:[%s3 + $0x80] sm:$0xff]
        %v1274 = vld [vmem:[%s3 + $0x88] sm:$0xff]
        %v1275 = vld [vmem:[%s3 + $0x90] sm:$0xff]
        %v1276 = vld [vmem:[%s3 + $0x98] sm:$0xff]
        %v1277 = vld [vmem:[%s3 + $0xa0] sm:$0xff]
        %v1278 = vld [vmem:[%s3 + $0xa8] sm:$0xff]
        %v1279 = vld [vmem:[%s3 + $0xb0] sm:$0xff]
        %v1280 = vld [vmem:[%s3 + $0xb8] sm:$0xff]
        %v1281 = vld [vmem:[%s3 + $0xc0] sm:$0xff]
        %v1282 = vld [vmem:[%s3 + $0xc8] sm:$0xff]
        %v1283 = vld [vmem:[%s3 + $0xd0] sm:$0xff]
        %v1284 = vld [vmem:[%s3 + $0xd8] sm:$0xff]
        %v1285 = vld [vmem:[%s3 + $0xe0] sm:$0xff]
        %v1286 = vld [vmem:[%s3 + $0xe8] sm:$0xff]
        %v1287 = vld [vmem:[%s3 + $0xf0] sm:$0xff]
        %v1288 = vld [vmem:[%s3 + $0xf8] sm:$0xff]
        %v1289 = vld [vmem:[%s3 + $0x100] sm:$0xff]
        %v1290 = vld [vmem:[%s3 + $0x108] sm:$0xff]
        %v1291 = vld [vmem:[%s3 + $0x110] sm:$0xff]
        %v1292 = vld [vmem:[%s3 + $0x118] sm:$0xff]
        %v1293 = vld [vmem:[%s3 + $0x120] sm:$0xff]
        %v1294 = vld [vmem:[%s3 + $0x128] sm:$0xff]
        %v1295 = vld [vmem:[%s3 + $0x130] sm:$0xff]
        %v1296 = vld [vmem:[%s3 + $0x138] sm:$0xff]
        %v1297 = vld [vmem:[%s3 + $0x140] sm:$0xff]
        %v1298 = vld [vmem:[%s3 + $0x148] sm:$0xff]
        %v1299 = vld [vmem:[%s3 + $0x150] sm:$0xff]
        %v1300 = vld [vmem:[%s3 + $0x158] sm:$0xff]
        %v1301 = vld [vmem:[%s3 + $0x160] sm:$0xff]
        %v1302 = vld [vmem:[%s3 + $0x168] sm:$0xff]
        %v1303 = vld [vmem:[%s3 + $0x170] sm:$0xff]
        %v1304 = vld [vmem:[%s3 + $0x178] sm:$0xff]
        %v1305 = vld [vmem:[%s3 + $0x180] sm:$0xff]
        %v1306 = vld [vmem:[%s3 + $0x188] sm:$0xff]
        %v1307 = vld [vmem:[%s3 + $0x190] sm:$0xff]
        %v1308 = vld [vmem:[%s3 + $0x198] sm:$0xff]
        %v1309 = vld [vmem:[%s3 + $0x1a0] sm:$0x33]
        %v1363 = vunpack.c.l.b16 %v1257
        %v1364 = vunpack.c.h.b16 %v1257
        %v1365 = vunpack.c.l.b16 %v1258
        %v1366 = vunpack.c.h.b16 %v1258
        %v1367 = vunpack.c.l.b16 %v1259
        %v1368 = vunpack.c.h.b16 %v1259
        %v1369 = vunpack.c.l.b16 %v1260
        %v1370 = vunpack.c.h.b16 %v1260
        %v1371 = vunpack.c.l.b16 %v1261
        %v1372 = vunpack.c.h.b16 %v1261
        %v1373 = vunpack.c.l.b16 %v1262
        %v1374 = vunpack.c.h.b16 %v1262
        %v1375 = vunpack.c.l.b16 %v1263
        %v1376 = vunpack.c.h.b16 %v1263
        %v1377 = vunpack.c.l.b16 %v1264
        %v1378 = vunpack.c.h.b16 %v1264
        %v1379 = vunpack.c.l.b16 %v1265
        %v1380 = vunpack.c.h.b16 %v1265
        %v1381 = vunpack.c.l.b16 %v1266
        %v1382 = vunpack.c.h.b16 %v1266
        %v1383 = vunpack.c.l.b16 %v1267
        %v1384 = vunpack.c.h.b16 %v1267
        %v1385 = vunpack.c.l.b16 %v1268
        %v1386 = vunpack.c.h.b16 %v1268
        %v1387 = vunpack.c.l.b16 %v1269
        %v1388 = vunpack.c.h.b16 %v1269
        %v1389 = vunpack.c.l.b16 %v1270
        %v1390 = vunpack.c.h.b16 %v1270
        %v1391 = vunpack.c.l.b16 %v1271
        %v1392 = vunpack.c.h.b16 %v1271
        %v1393 = vunpack.c.l.b16 %v1272
        %v1394 = vunpack.c.h.b16 %v1272
        %v1395 = vunpack.c.l.b16 %v1273
        %v1396 = vunpack.c.h.b16 %v1273
        %v1397 = vunpack.c.l.b16 %v1274
        %v1398 = vunpack.c.h.b16 %v1274
        %v1399 = vunpack.c.l.b16 %v1275
        %v1400 = vunpack.c.h.b16 %v1275
        %v1401 = vunpack.c.l.b16 %v1276
        %v1402 = vunpack.c.h.b16 %v1276
        %v1403 = vunpack.c.l.b16 %v1277
        %v1404 = vunpack.c.h.b16 %v1277
        %v1405 = vunpack.c.l.b16 %v1278
        %v1406 = vunpack.c.h.b16 %v1278
        %v1407 = vunpack.c.l.b16 %v1279
        %v1408 = vunpack.c.h.b16 %v1279
        %v1409 = vunpack.c.l.b16 %v1280
        %v1410 = vunpack.c.h.b16 %v1280
        %v1411 = vunpack.c.l.b16 %v1281
        %v1412 = vunpack.c.h.b16 %v1281
        %v1413 = vunpack.c.l.b16 %v1282
        %v1414 = vunpack.c.h.b16 %v1282
        %v1415 = vunpack.c.l.b16 %v1283
        %v1416 = vunpack.c.h.b16 %v1283
        %v1417 = vunpack.c.l.b16 %v1284
        %v1418 = vunpack.c.h.b16 %v1284
        %v1419 = vunpack.c.l.b16 %v1285
        %v1420 = vunpack.c.h.b16 %v1285
        %v1421 = vunpack.c.l.b16 %v1286
        %v1422 = vunpack.c.h.b16 %v1286
        %v1423 = vunpack.c.l.b16 %v1287
        %v1424 = vunpack.c.h.b16 %v1287
        %v1425 = vunpack.c.l.b16 %v1288
        %v1426 = vunpack.c.h.b16 %v1288
        %v1427 = vunpack.c.l.b16 %v1289
        %v1428 = vunpack.c.h.b16 %v1289
        %v1429 = vunpack.c.l.b16 %v1290
        %v1430 = vunpack.c.h.b16 %v1290
        %v1431 = vunpack.c.l.b16 %v1291
        %v1432 = vunpack.c.h.b16 %v1291
        %v1433 = vunpack.c.l.b16 %v1292
        %v1434 = vunpack.c.h.b16 %v1292
        %v1435 = vunpack.c.l.b16 %v1293
        %v1436 = vunpack.c.h.b16 %v1293
        %v1437 = vunpack.c.l.b16 %v1294
        %v1438 = vunpack.c.h.b16 %v1294
        %v1439 = vunpack.c.l.b16 %v1295
        %v1440 = vunpack.c.h.b16 %v1295
        %v1441 = vunpack.c.l.b16 %v1296
        %v1442 = vunpack.c.h.b16 %v1296
        %v1443 = vunpack.c.l.b16 %v1297
        %v1444 = vunpack.c.h.b16 %v1297
        %v1445 = vunpack.c.l.b16 %v1298
        %v1446 = vunpack.c.h.b16 %v1298
        %v1447 = vunpack.c.l.b16 %v1299
        %v1448 = vunpack.c.h.b16 %v1299
        %v1449 = vunpack.c.l.b16 %v1300
        %v1450 = vunpack.c.h.b16 %v1300
        %v1451 = vunpack.c.l.b16 %v1301
        %v1452 = vunpack.c.h.b16 %v1301
        %v1453 = vunpack.c.l.b16 %v1302
        %v1454 = vunpack.c.h.b16 %v1302
        %v1455 = vunpack.c.l.b16 %v1303
        %v1456 = vunpack.c.h.b16 %v1303
        %v1457 = vunpack.c.l.b16 %v1304
        %v1458 = vunpack.c.h.b16 %v1304
        %v1459 = vunpack.c.l.b16 %v1305
        %v1460 = vunpack.c.h.b16 %v1305
        %v1461 = vunpack.c.l.b16 %v1306
        %v1462 = vunpack.c.h.b16 %v1306
        %v1463 = vunpack.c.l.b16 %v1307
        %v1464 = vunpack.c.h.b16 %v1307
        %v1465 = vunpack.c.l.b16 %v1308
        %v1466 = vunpack.c.h.b16 %v1308
        %v1467 = vunpack.c.l.b16 %v1309
        %v1468 = vunpack.c.h.b16 %v1309
        %v1469 = vpack.c.b16 %v1365, %v1363
        %v1470 = vpack.c.b16 %v1366, %v1364
        %v1471 = vpack.c.b16 %v1369, %v1367
        %v1472 = vpack.c.b16 %v1370, %v1368
        %v1473 = vpack.c.b16 %v1373, %v1371
        %v1474 = vpack.c.b16 %v1374, %v1372
        %v1475 = vpack.c.b16 %v1377, %v1375
        %v1476 = vpack.c.b16 %v1378, %v1376
        %v1477 = vpack.c.b16 %v1381, %v1379
        %v1478 = vpack.c.b16 %v1382, %v1380
        %v1479 = vpack.c.b16 %v1385, %v1383
        %v1480 = vpack.c.b16 %v1386, %v1384
        %v1481 = vpack.c.b16 %v1389, %v1387
        %v1482 = vpack.c.b16 %v1390, %v1388
        %v1483 = vpack.c.b16 %v1393, %v1391
        %v1484 = vpack.c.b16 %v1394, %v1392
        %v1485 = vpack.c.b16 %v1397, %v1395
        %v1486 = vpack.c.b16 %v1398, %v1396
        %v1487 = vpack.c.b16 %v1401, %v1399
        %v1488 = vpack.c.b16 %v1402, %v1400
        %v1489 = vpack.c.b16 %v1405, %v1403
        %v1490 = vpack.c.b16 %v1406, %v1404
        %v1491 = vpack.c.b16 %v1409, %v1407
        %v1492 = vpack.c.b16 %v1410, %v1408
        %v1493 = vpack.c.b16 %v1413, %v1411
        %v1494 = vpack.c.b16 %v1414, %v1412
        %v1495 = vpack.c.b16 %v1417, %v1415
        %v1496 = vpack.c.b16 %v1418, %v1416
        %v1497 = vpack.c.b16 %v1421, %v1419
        %v1498 = vpack.c.b16 %v1422, %v1420
        %v1499 = vpack.c.b16 %v1425, %v1423
        %v1500 = vpack.c.b16 %v1426, %v1424
        %v1501 = vpack.c.b16 %v1429, %v1427
        %v1502 = vpack.c.b16 %v1430, %v1428
        %v1503 = vpack.c.b16 %v1433, %v1431
        %v1504 = vpack.c.b16 %v1434, %v1432
        %v1505 = vpack.c.b16 %v1437, %v1435
        %v1506 = vpack.c.b16 %v1438, %v1436
        %v1507 = vpack.c.b16 %v1441, %v1439
        %v1508 = vpack.c.b16 %v1442, %v1440
        %v1509 = vpack.c.b16 %v1445, %v1443
        %v1510 = vpack.c.b16 %v1446, %v1444
        %v1511 = vpack.c.b16 %v1449, %v1447
        %v1512 = vpack.c.b16 %v1450, %v1448
        %v1513 = vpack.c.b16 %v1453, %v1451
        %v1514 = vpack.c.b16 %v1454, %v1452
        %v1515 = vpack.c.b16 %v1457, %v1455
        %v1516 = vpack.c.b16 %v1458, %v1456
        %v1517 = vpack.c.b16 %v1461, %v1459
        %v1518 = vpack.c.b16 %v1462, %v1460
        %v1519 = vpack.c.b16 %v1465, %v1463
        %v1520 = vpack.c.b16 %v1466, %v1464
        %v1521 = vpack.c.b16 %v1467, %v1467
        %v1522 = vpack.c.b16 %v1468, %v1468
        %vm1575 = vcmask 293888
        %v1577 = vsel %vm1575, %v1256, 0
        %v1580 = vsel %vm1149, %v1521, 0
        %v1583 = vsel %vm1149, %v1522, 0
        %1585 = vmatprep.subr.bf16.mxu0 %v1484
        %1586 = vmatpush1.bf16.msra.mxu0 %v1483
        %1587 = vmatprep.subr.bf16.mxu0 %v1482
        %1588 = vmatpush1.bf16.msra.mxu0 %v1481
        %1589 = vmatprep.subr.bf16.mxu0 %v1480
        %1590 = vmatpush1.bf16.msra.mxu0 %v1479
        %1591 = vmatprep.subr.bf16.mxu0 %v1478
        %1592 = vmatpush1.bf16.msra.mxu0 %v1477
        %1593 = vmatprep.subr.bf16.mxu0 %v1476
        %1594 = vmatpush1.bf16.msra.mxu0 %v1475
        %1595 = vmatprep.subr.bf16.mxu0 %v1474
        %1596 = vmatpush1.bf16.msra.mxu0 %v1473
        %1597 = vmatprep.subr.bf16.mxu0 %v1472
        %1598 = vmatpush1.bf16.msra.mxu0 %v1471
        %1599 = vmatprep.subr.bf16.mxu0 %v1470
        %1600 = vmatpush1.bf16.msra.mxu0 %v1469
        %1601 = vmatprep.subr.bf16.mxu0 %v1500
        %1602 = vmatpush2.bf16.msra.mxu0 %v1499
        %1603 = vmatprep.subr.bf16.mxu0 %v1498
        %1604 = vmatpush2.bf16.msra.mxu0 %v1497
        %1605 = vmatprep.subr.bf16.mxu0 %v1496
        %1606 = vmatpush2.bf16.msra.mxu0 %v1495
        %1607 = vmatprep.subr.bf16.mxu0 %v1494
        %1608 = vmatpush2.bf16.msra.mxu0 %v1493
        %1609 = vmatprep.subr.bf16.mxu0 %v1492
        %1610 = vmatpush2.bf16.msra.mxu0 %v1491
        %1611 = vmatprep.subr.bf16.mxu0 %v1490
        %1612 = vmatpush2.bf16.msra.mxu0 %v1489
        %1613 = vmatprep.subr.bf16.mxu0 %v1488
        %1614 = vmatpush2.bf16.msra.mxu0 %v1487
        %1615 = vmatprep.subr.bf16.mxu0 %v1486
        %1616 = vmatpush2.bf16.msra.mxu0 %v1485
        %1617 = vmatprep.mubr.bf16.mxu0 %v1254
        %1618 = vmatmul.mubr.bf16.gmra.mxu0 %v1253
        %v1619 = vpop.f32.mrf.mxu0
        %v1620 = vadd.f32 0.0, %v1619
        %v1621 = vpop.f32.mrf.mxu0
        %v1622 = vadd.f32 0.0, %v1621
        %v1623 = vpop.f32.mrf.mxu0
        %v1624 = vadd.f32 0.0, %v1623
        %v1625 = vpop.f32.mrf.mxu0
        %v1626 = vadd.f32 0.0, %v1625
        %1627 = vdwg.mxu0
        %1628 = vmatprep.subr.bf16.mxu0 %v1516
        %1629 = vmatpush1.bf16.msra.mxu0 %v1515
        %1630 = vmatprep.subr.bf16.mxu0 %v1514
        %1631 = vmatpush1.bf16.msra.mxu0 %v1513
        %1632 = vmatprep.subr.bf16.mxu0 %v1512
        %1633 = vmatpush1.bf16.msra.mxu0 %v1511
        %1634 = vmatprep.subr.bf16.mxu0 %v1510
        %1635 = vmatpush1.bf16.msra.mxu0 %v1509
        %1636 = vmatprep.subr.bf16.mxu0 %v1508
        %1637 = vmatpush1.bf16.msra.mxu0 %v1507
        %1638 = vmatprep.subr.bf16.mxu0 %v1506
        %1639 = vmatpush1.bf16.msra.mxu0 %v1505
        %1640 = vmatprep.subr.bf16.mxu0 %v1504
        %1641 = vmatpush1.bf16.msra.mxu0 %v1503
        %1642 = vmatprep.subr.bf16.mxu0 %v1502
        %1643 = vmatpush1.bf16.msra.mxu0 %v1501
        %1644 = vmatprep.subr.bf16.mxu0 0
        %1645 = vmatpush2.bf16.msra.mxu0 0
        %1646 = vmatprep.subr.bf16.mxu0 0
        %1647 = vmatpush2.bf16.msra.mxu0 0
        %1648 = vmatprep.subr.bf16.mxu0 0
        %1649 = vmatpush2.bf16.msra.mxu0 0
        %1650 = vmatprep.subr.bf16.mxu0 0
        %1651 = vmatpush2.bf16.msra.mxu0 0
        %1652 = vmatprep.subr.bf16.mxu0 0
        %1653 = vmatpush2.bf16.msra.mxu0 0
        %1654 = vmatprep.subr.bf16.mxu0 %v1583
        %1655 = vmatpush2.bf16.msra.mxu0 %v1580
        %1656 = vmatprep.subr.bf16.mxu0 %v1520
        %1657 = vmatpush2.bf16.msra.mxu0 %v1519
        %1658 = vmatprep.subr.bf16.mxu0 %v1518
        %1659 = vmatpush2.bf16.msra.mxu0 %v1517
        %1660 = vmatprep.mubr.bf16.mxu0 %v1577
        %1661 = vmatmul.mubr.bf16.gmra.mxu0 %v1255
        %v1662 = vpop.f32.mrf.mxu0
        %v1663 = vadd.f32 %v1620, %v1662
        %v1664 = vpop.f32.mrf.mxu0
        %v1665 = vadd.f32 %v1622, %v1664
        %v1666 = vpop.f32.mrf.mxu0
        %v1667 = vadd.f32 %v1624, %v1666
        %v1668 = vpop.f32.mrf.mxu0
        %v1669 = vadd.f32 %v1626, %v1668
        %1670 = vdwg.mxu0
        %vm1675 = vcmask 1042432
        %v1676 = vrot.slane %v1663, 5
        %v1677 = vrot.slane %v1667, 5
        %v1678 = vsel %vm1675, %v1676, %v1677
        %v1679 = vrot.slane %v1665, 5
        %v1680 = vrot.slane %v1669, 5
        %v1681 = vsel %vm1675, %v1679, %v1680
        %v1684 = vmax.f32 %v1663, %v1678
        %v1685 = vmax.f32 %v1665, %v1681
        %1688 = vrot.lane.b32.xlu0 %v1684, 48
        %v1689 = vpop.permute.xlu0 %1688
        %1690 = vrot.lane.b32.xlu0 %v1685, 48
        %v1691 = vpop.permute.xlu0 %1690
        %vm1692 = vcmask 392192
        %v1693 = vsel %vm1692, %v1689, %v1691
        %v1695 = vmax.f32 %v1684, %v1693
        %v1696 = vld [vmem:[%s4] sm:$0x1]
        %v1698 = vlaneseq
        %v1699 = vshrl.u32 %v1698, 7
        %v1700 = vsub.s32 0, %v1699
        %v1701 = vrot.slane %v1696, %v1700
        %v1703 = vadd.f32 %v1695, %v1701
        %v1704 = vmax.f32 %v1703, 0.0
        %v1705 = vlaneseq
        %vm1706 = vcmp.ge.s32.totalorder %v1705, 0
        %vm1707 = vcmp.lt.s32.totalorder %v1705, 80
        %vm1708 = vmand %vm1706, %vm1707
        %1709 = vst.msk [vmem:[#allocation4] sm:$0x1] %vm1708, %v1704
        %v1712 = vunpack.c.l.s4 1966171168
        %v1713 = vunpack.c.0.s8 %v1712
        %v1714 = vlaneseq
        %v1715 = vshrl.u32 %v1714, 7
        %v1716 = vsub.s32 %v1713, %v1715
        %v1717 = vrot.slane %v1704, %v1716
        %v1718 = vcombine.high %v1717, %v1717
        %v1720 = vunpack.c.l.s4 1966171168
        %v1721 = vunpack.c.0.s8 %v1720
        %v1722 = vlaneseq
        %v1723 = vshrl.u32 %v1722, 7
        %v1724 = vsub.s32 %v1721, %v1723
        %v1725 = vrot.slane %v1717, %v1724
        %v1727 = vunpack.c.l.s4 1966171168
        %v1728 = vunpack.c.0.s8 %v1727
        %v1729 = vlaneseq
        %v1730 = vshrl.u32 %v1729, 7
        %v1731 = vsub.s32 %v1728, %v1730
        %v1732 = vrot.slane %v1718, %v1731
        %1733 = vrot.lane.b32.xlu0 %v1732, 80
        %v1734 = vpop.permute.xlu0 %1733
        %v1735 = vrot.slane %v1734, 7
        %vm1736 = vcmask 654336
        %v1737 = vsel %vm1736, %v1735, %v1734
        %vm1739 = vcmp.ge.s32.totalorder %v1705, 80
        %vm1740 = vcmp.lt.s32.totalorder %v1705, 160
        %vm1741 = vmand %vm1739, %vm1740
        %1742 = vst.msk [vmem:[#allocation4] sm:$0x3] %vm1741, %v1737
        %v1743 = vcombine.high %v1725, %v1725
        %1744 = vrot.lane.b32.xlu0 %v1743, 32
        %v1745 = vpop.permute.xlu0 %1744
        %vm1747 = vcmp.ge.s32.totalorder %v1705, 32
        %vm1748 = vcmp.lt.s32.totalorder %v1705, 112
        %vm1749 = vmand %vm1747, %vm1748
        %1750 = vst.msk [vmem:[#allocation4 + $0x1] sm:$0x1] %vm1749, %v1745
        %v1751 = vcombine.high %v1732, %v1732
        %1752 = vrot.lane.b32.xlu0 %v1751, 112
        %v1753 = vpop.permute.xlu0 %1752
        %v1754 = vrot.slane %v1753, 7
        %vm1755 = vcmask 916480
        %v1756 = vsel %vm1755, %v1754, %v1753
        %vm1758 = vcmp.ge.s32.totalorder %v1705, 112
        %vm1759 = vcmp.lt.s32.totalorder %v1705, 192
        %vm1760 = vmand %vm1758, %vm1759
        %1761 = vst.msk [vmem:[#allocation4 + $0x1] sm:$0x3] %vm1760, %v1756
        %v1762 = vcombine.high %v1704, %v1704
        %v1764 = vunpack.c.l.s4 1966171168
        %v1765 = vunpack.c.0.s8 %v1764
        %v1766 = vlaneseq
        %v1767 = vshrl.u32 %v1766, 7
        %v1768 = vsub.s32 %v1765, %v1767
        %v1769 = vrot.slane %v1762, %v1768
        %v1771 = vunpack.c.l.s4 1966171168
        %v1772 = vunpack.c.0.s8 %v1771
        %v1773 = vlaneseq
        %v1774 = vshrl.u32 %v1773, 7
        %v1775 = vsub.s32 %v1772, %v1774
        %v1776 = vrot.slane %v1769, %v1775
        %1777 = vrot.lane.b32.xlu0 %v1776, 64
        %v1778 = vpop.permute.xlu0 %1777
        %v1779 = vrot.slane %v1778, 7
        %vm1780 = vcmask 523264
        %v1781 = vsel %vm1780, %v1779, %v1778
        %vm1783 = vcmp.ge.s32.totalorder %v1705, 64
        %vm1784 = vcmp.lt.s32.totalorder %v1705, 144
        %vm1785 = vmand %vm1783, %vm1784
        %1786 = vst.msk [vmem:[#allocation4 + $0x2] sm:$0x3] %vm1785, %v1781
        %v1787 = vld [vmem:[#allocation4] sm:$0xf]
        %v1789 = vlaneseq
        %v1790 = vshrl.u32 %v1789, 7
        %v1791 = vsub.s32 0, %v1790
        %v1792 = vrot.slane %v1787, %v1791
        %v1793 = vlaneseq
        %v1794 = vshrl.u32 %v1793, 7
        %v1795 = vsub.s32 1, %v1794
        %v1796 = vrot.slane %v1787, %v1795
        %v1797 = vlaneseq
        %v1798 = vshrl.u32 %v1797, 7
        %v1799 = vsub.s32 2, %v1798
        %v1800 = vrot.slane %v1787, %v1799
        %v1801 = vlaneseq
        %v1802 = vshrl.u32 %v1801, 7
        %v1803 = vsub.s32 3, %v1802
        %v1804 = vrot.slane %v1787, %v1803
        %v1809 = vpack.c.bf16 %v1792, %v1792
        %v1810 = vpack.c.bf16 %v1796, %v1796
        %v1811 = vpack.c.bf16 %v1800, %v1800
        %v1812 = vpack.c.bf16 %v1804, %v1804
        %v1813 = vld [vmem:[%s5] sm:$0xf]
        %v1814 = vld [vmem:[%s5 + $0x4] sm:$0xf]
        %v1815 = vld [vmem:[%s5 + $0x8] sm:$0xf]
        %v1816 = vld [vmem:[%s5 + $0xc] sm:$0xf]
        %v1817 = vld [vmem:[%s5 + $0x10] sm:$0xf]
        %v1818 = vld [vmem:[%s5 + $0x14] sm:$0xf]
        %v1819 = vld [vmem:[%s5 + $0x18] sm:$0xf]
        %v1820 = vld [vmem:[%s5 + $0x1c] sm:$0xf]
        %v1821 = vld [vmem:[%s5 + $0x20] sm:$0xf]
        %v1822 = vld [vmem:[%s5 + $0x24] sm:$0xf]
        %v1823 = vld [vmem:[%s5 + $0x28] sm:$0xf]
        %v1824 = vld [vmem:[%s5 + $0x2c] sm:$0xf]
        %v1825 = vld [vmem:[%s5 + $0x30] sm:$0xf]
        %v1826 = vld [vmem:[%s5 + $0x34] sm:$0xf]
        %v1827 = vld [vmem:[%s5 + $0x38] sm:$0xf]
        %v1828 = vld [vmem:[%s5 + $0x3c] sm:$0xf]
        %v1829 = vld [vmem:[%s5 + $0x40] sm:$0xf]
        %v1830 = vld [vmem:[%s5 + $0x44] sm:$0xf]
        %v1831 = vld [vmem:[%s5 + $0x48] sm:$0xf]
        %v1832 = vld [vmem:[%s5 + $0x4c] sm:$0xf]
        %v1833 = vld [vmem:[%s5 + $0x50] sm:$0xf]
        %v1834 = vld [vmem:[%s5 + $0x54] sm:$0xf]
        %v1835 = vld [vmem:[%s5 + $0x58] sm:$0xf]
        %v1836 = vld [vmem:[%s5 + $0x5c] sm:$0xf]
        %v1837 = vld [vmem:[%s5 + $0x60] sm:$0xf]
        %v1838 = vld [vmem:[%s5 + $0x64] sm:$0xf]
        %v1839 = vld [vmem:[%s5 + $0x68] sm:$0xf]
        %v1840 = vld [vmem:[%s5 + $0x6c] sm:$0xf]
        %v1841 = vld [vmem:[%s5 + $0x70] sm:$0xf]
        %v1842 = vld [vmem:[%s5 + $0x74] sm:$0xf]
        %v1843 = vld [vmem:[%s5 + $0x78] sm:$0xf]
        %v1844 = vld [vmem:[%s5 + $0x7c] sm:$0xf]
        %v1845 = vld [vmem:[%s5 + $0x80] sm:$0xf]
        %v1846 = vld [vmem:[%s5 + $0x84] sm:$0xf]
        %v1847 = vld [vmem:[%s5 + $0x88] sm:$0xf]
        %v1848 = vld [vmem:[%s5 + $0x8c] sm:$0xf]
        %v1849 = vld [vmem:[%s5 + $0x90] sm:$0xf]
        %v1850 = vld [vmem:[%s5 + $0x94] sm:$0xf]
        %v1851 = vld [vmem:[%s5 + $0x98] sm:$0xf]
        %v1852 = vld [vmem:[%s5 + $0x9c] sm:$0xf]
        %v1853 = vld [vmem:[%s5 + $0xa0] sm:$0xf]
        %v1854 = vld [vmem:[%s5 + $0xa4] sm:$0xf]
        %v1855 = vld [vmem:[%s5 + $0xa8] sm:$0xf]
        %v1856 = vld [vmem:[%s5 + $0xac] sm:$0xf]
        %v1857 = vld [vmem:[%s5 + $0xb0] sm:$0xf]
        %v1858 = vld [vmem:[%s5 + $0xb4] sm:$0xf]
        %v1859 = vld [vmem:[%s5 + $0xb8] sm:$0xf]
        %v1860 = vld [vmem:[%s5 + $0xbc] sm:$0xf]
        %v1861 = vld [vmem:[%s5 + $0xc0] sm:$0xf]
        %v1862 = vld [vmem:[%s5 + $0xc4] sm:$0xf]
        %v1863 = vld [vmem:[%s6] sm:$0x1]
        %v1914 = vunpack.c.l.b16 %v1813
        %v1915 = vunpack.c.l.b16 %v1814
        %v1916 = vunpack.c.l.b16 %v1815
        %v1917 = vunpack.c.l.b16 %v1816
        %v1918 = vunpack.c.l.b16 %v1817
        %v1919 = vunpack.c.l.b16 %v1818
        %v1920 = vunpack.c.l.b16 %v1819
        %v1921 = vunpack.c.l.b16 %v1820
        %v1922 = vunpack.c.l.b16 %v1821
        %v1923 = vunpack.c.l.b16 %v1822
        %v1924 = vunpack.c.l.b16 %v1823
        %v1925 = vunpack.c.l.b16 %v1824
        %v1926 = vunpack.c.l.b16 %v1825
        %v1927 = vunpack.c.l.b16 %v1826
        %v1928 = vunpack.c.l.b16 %v1827
        %v1929 = vunpack.c.l.b16 %v1828
        %v1930 = vunpack.c.l.b16 %v1829
        %v1931 = vunpack.c.l.b16 %v1830
        %v1932 = vunpack.c.l.b16 %v1831
        %v1933 = vunpack.c.l.b16 %v1832
        %v1934 = vunpack.c.l.b16 %v1833
        %v1935 = vunpack.c.l.b16 %v1834
        %v1936 = vunpack.c.l.b16 %v1835
        %v1937 = vunpack.c.l.b16 %v1836
        %v1938 = vunpack.c.l.b16 %v1837
        %v1939 = vunpack.c.l.b16 %v1838
        %v1940 = vunpack.c.l.b16 %v1839
        %v1941 = vunpack.c.l.b16 %v1840
        %v1942 = vunpack.c.l.b16 %v1841
        %v1943 = vunpack.c.l.b16 %v1842
        %v1944 = vunpack.c.l.b16 %v1843
        %v1945 = vunpack.c.l.b16 %v1844
        %v1946 = vunpack.c.l.b16 %v1845
        %v1947 = vunpack.c.l.b16 %v1846
        %v1948 = vunpack.c.l.b16 %v1847
        %v1949 = vunpack.c.l.b16 %v1848
        %v1950 = vunpack.c.l.b16 %v1849
        %v1951 = vunpack.c.l.b16 %v1850
        %v1952 = vunpack.c.l.b16 %v1851
        %v1953 = vunpack.c.l.b16 %v1852
        %v1954 = vunpack.c.l.b16 %v1853
        %v1955 = vunpack.c.l.b16 %v1854
        %v1956 = vunpack.c.l.b16 %v1855
        %v1957 = vunpack.c.l.b16 %v1856
        %v1958 = vunpack.c.l.b16 %v1857
        %v1959 = vunpack.c.l.b16 %v1858
        %v1960 = vunpack.c.l.b16 %v1859
        %v1961 = vunpack.c.l.b16 %v1860
        %v1962 = vunpack.c.l.b16 %v1861
        %v1963 = vunpack.c.l.b16 %v1862
        %v1964 = vpack.c.b16 %v1915, %v1914
        %v1965 = vpack.c.b16 %v1917, %v1916
        %v1966 = vpack.c.b16 %v1919, %v1918
        %v1967 = vpack.c.b16 %v1921, %v1920
        %v1968 = vpack.c.b16 %v1923, %v1922
        %v1969 = vpack.c.b16 %v1925, %v1924
        %v1970 = vpack.c.b16 %v1927, %v1926
        %v1971 = vpack.c.b16 %v1929, %v1928
        %v1972 = vpack.c.b16 %v1931, %v1930
        %v1973 = vpack.c.b16 %v1933, %v1932
        %v1974 = vpack.c.b16 %v1935, %v1934
        %v1975 = vpack.c.b16 %v1937, %v1936
        %v1976 = vpack.c.b16 %v1939, %v1938
        %v1977 = vpack.c.b16 %v1941, %v1940
        %v1978 = vpack.c.b16 %v1943, %v1942
        %v1979 = vpack.c.b16 %v1945, %v1944
        %v1980 = vpack.c.b16 %v1947, %v1946
        %v1981 = vpack.c.b16 %v1949, %v1948
        %v1982 = vpack.c.b16 %v1951, %v1950
        %v1983 = vpack.c.b16 %v1953, %v1952
        %v1984 = vpack.c.b16 %v1955, %v1954
        %v1985 = vpack.c.b16 %v1957, %v1956
        %v1986 = vpack.c.b16 %v1959, %v1958
        %v1987 = vpack.c.b16 %v1961, %v1960
        %v1988 = vpack.c.b16 %v1963, %v1962
        %vm2014 = vcmask 130048
        %v2016 = vsel %vm2014, %v1812, 0
        %2018 = vmatprep.subr.bf16.mxu0 0
        %2019 = vmatpush1.bf16.msra.mxu0 %v1971
        %2020 = vmatprep.subr.bf16.mxu0 0
        %2021 = vmatpush1.bf16.msra.mxu0 %v1970
        %2022 = vmatprep.subr.bf16.mxu0 0
        %2023 = vmatpush1.bf16.msra.mxu0 %v1969
        %2024 = vmatprep.subr.bf16.mxu0 0
        %2025 = vmatpush1.bf16.msra.mxu0 %v1968
        %2026 = vmatprep.subr.bf16.mxu0 0
        %2027 = vmatpush1.bf16.msra.mxu0 %v1967
        %2028 = vmatprep.subr.bf16.mxu0 0
        %2029 = vmatpush1.bf16.msra.mxu0 %v1966
        %2030 = vmatprep.subr.bf16.mxu0 0
        %2031 = vmatpush1.bf16.msra.mxu0 %v1965
        %2032 = vmatprep.subr.bf16.mxu0 0
        %2033 = vmatpush1.bf16.msra.mxu0 %v1964
        %2034 = vmatprep.subr.bf16.mxu0 0
        %2035 = vmatpush2.bf16.msra.mxu0 %v1979
        %2036 = vmatprep.subr.bf16.mxu0 0
        %2037 = vmatpush2.bf16.msra.mxu0 %v1978
        %2038 = vmatprep.subr.bf16.mxu0 0
        %2039 = vmatpush2.bf16.msra.mxu0 %v1977
        %2040 = vmatprep.subr.bf16.mxu0 0
        %2041 = vmatpush2.bf16.msra.mxu0 %v1976
        %2042 = vmatprep.subr.bf16.mxu0 0
        %2043 = vmatpush2.bf16.msra.mxu0 %v1975
        %2044 = vmatprep.subr.bf16.mxu0 0
        %2045 = vmatpush2.bf16.msra.mxu0 %v1974
        %2046 = vmatprep.subr.bf16.mxu0 0
        %2047 = vmatpush2.bf16.msra.mxu0 %v1973
        %2048 = vmatprep.subr.bf16.mxu0 0
        %2049 = vmatpush2.bf16.msra.mxu0 %v1972
        %2050 = vmatprep.mubr.bf16.mxu0 %v1810
        %2051 = vmatmul.mubr.bf16.gmra.mxu0 %v1809
        %v2052 = vpop.f32.mrf.mxu0
        %v2053 = vadd.f32 %v1863, %v2052
        %v2054 = vpop.f32.mrf.mxu0
        %v2055 = vpop.f32.mrf.mxu0
        %v2056 = vpop.f32.mrf.mxu0
        %2057 = vdwg.mxu0
        %2058 = vmatprep.subr.bf16.mxu0 0
        %2059 = vmatpush1.bf16.msra.mxu0 %v1987
        %2060 = vmatprep.subr.bf16.mxu0 0
        %2061 = vmatpush1.bf16.msra.mxu0 %v1986
        %2062 = vmatprep.subr.bf16.mxu0 0
        %2063 = vmatpush1.bf16.msra.mxu0 %v1985
        %2064 = vmatprep.subr.bf16.mxu0 0
        %2065 = vmatpush1.bf16.msra.mxu0 %v1984
        %2066 = vmatprep.subr.bf16.mxu0 0
        %2067 = vmatpush1.bf16.msra.mxu0 %v1983
        %2068 = vmatprep.subr.bf16.mxu0 0
        %2069 = vmatpush1.bf16.msra.mxu0 %v1982
        %2070 = vmatprep.subr.bf16.mxu0 0
        %2071 = vmatpush1.bf16.msra.mxu0 %v1981
        %2072 = vmatprep.subr.bf16.mxu0 0
        %2073 = vmatpush1.bf16.msra.mxu0 %v1980
        %2074 = vmatprep.subr.bf16.mxu0 0
        %2075 = vmatpush2.bf16.msra.mxu0 0
        %2076 = vmatprep.subr.bf16.mxu0 0
        %2077 = vmatpush2.bf16.msra.mxu0 0
        %2078 = vmatprep.subr.bf16.mxu0 0
        %2079 = vmatpush2.bf16.msra.mxu0 0
        %2080 = vmatprep.subr.bf16.mxu0 0
        %2081 = vmatpush2.bf16.msra.mxu0 0
        %2082 = vmatprep.subr.bf16.mxu0 0
        %2083 = vmatpush2.bf16.msra.mxu0 0
        %2084 = vmatprep.subr.bf16.mxu0 0
        %2085 = vmatpush2.bf16.msra.mxu0 0
        %2086 = vmatprep.subr.bf16.mxu0 0
        %2087 = vmatpush2.bf16.msra.mxu0 0
        %2088 = vmatprep.subr.bf16.mxu0 0
        %2089 = vmatpush2.bf16.msra.mxu0 %v1988
        %2090 = vmatprep.mubr.bf16.mxu0 %v2016
        %2091 = vmatmul.mubr.bf16.gmra.mxu0 %v1811
        %v2092 = vpop.f32.mrf.mxu0
        %v2093 = vadd.f32 %v2053, %v2092
        %v2094 = vpop.f32.mrf.mxu0
        %v2095 = vpop.f32.mrf.mxu0
        %v2096 = vpop.f32.mrf.mxu0
        %2097 = vdwg.mxu0
        %v2098 = vmax.f32 %v2093, 0.0
        %v2099 = vpack.c.bf16 %v2098, %v2098
        %v2100 = vld [vmem:[%s7] sm:$0xf]
        %v2101 = vld [vmem:[%s7 + $0x4] sm:$0xf]
        %v2102 = vld [vmem:[%s7 + $0x8] sm:$0xf]
        %v2103 = vld [vmem:[%s7 + $0xc] sm:$0xf]
        %v2104 = vld [vmem:[%s7 + $0x10] sm:$0xf]
        %v2105 = vld [vmem:[%s7 + $0x14] sm:$0xf]
        %v2106 = vld [vmem:[%s7 + $0x18] sm:$0xf]
        %v2107 = vld [vmem:[%s7 + $0x1c] sm:$0xf]
        %v2108 = vld [vmem:[%s7 + $0x20] sm:$0xf]
        %v2109 = vld [vmem:[%s7 + $0x24] sm:$0xf]
        %v2110 = vld [vmem:[%s7 + $0x28] sm:$0xf]
        %v2111 = vld [vmem:[%s7 + $0x2c] sm:$0xf]
        %v2112 = vld [vmem:[%s7 + $0x30] sm:$0xf]
        %v2113 = vld [vmem:[%s7 + $0x34] sm:$0xf]
        %v2114 = vld [vmem:[%s7 + $0x38] sm:$0xf]
        %v2115 = vld [vmem:[%s8] sm:$0x1]
        %v2131 = vunpack.c.l.b16 %v2100
        %v2132 = vunpack.c.l.b16 %v2101
        %v2133 = vunpack.c.l.b16 %v2102
        %v2134 = vunpack.c.l.b16 %v2103
        %v2135 = vunpack.c.l.b16 %v2104
        %v2136 = vunpack.c.l.b16 %v2105
        %v2137 = vunpack.c.l.b16 %v2106
        %v2138 = vunpack.c.l.b16 %v2107
        %v2139 = vunpack.c.l.b16 %v2108
        %v2140 = vunpack.c.l.b16 %v2109
        %v2141 = vunpack.c.l.b16 %v2110
        %v2142 = vunpack.c.l.b16 %v2111
        %v2143 = vunpack.c.l.b16 %v2112
        %v2144 = vunpack.c.l.b16 %v2113
        %v2145 = vunpack.c.l.b16 %v2114
        %v2146 = vpack.c.b16 %v2132, %v2131
        %v2147 = vpack.c.b16 %v2134, %v2133
        %v2148 = vpack.c.b16 %v2136, %v2135
        %v2149 = vpack.c.b16 %v2138, %v2137
        %v2150 = vpack.c.b16 %v2140, %v2139
        %v2151 = vpack.c.b16 %v2142, %v2141
        %v2152 = vpack.c.b16 %v2144, %v2143
        %v2153 = vpack.c.b16 %v2145, %v2145
        %vm2161 = vcmask 982016
        %v2163 = vsel %vm2161, %v2099, 0
        %vm2165 = vcmask 1043456
        %v2167 = vsel %vm2165, %v2153, 0
        %2169 = vmatprep.subr.bf16.mxu0 0
        %2170 = vmatpush1.bf16.msra.mxu0 %v2167
        %2171 = vmatprep.subr.bf16.mxu0 0
        %2172 = vmatpush1.bf16.msra.mxu0 %v2152
        %2173 = vmatprep.subr.bf16.mxu0 0
        %2174 = vmatpush1.bf16.msra.mxu0 %v2151
        %2175 = vmatprep.subr.bf16.mxu0 0
        %2176 = vmatpush1.bf16.msra.mxu0 %v2150
        %2177 = vmatprep.subr.bf16.mxu0 0
        %2178 = vmatpush1.bf16.msra.mxu0 %v2149
        %2179 = vmatprep.subr.bf16.mxu0 0
        %2180 = vmatpush1.bf16.msra.mxu0 %v2148
        %2181 = vmatprep.subr.bf16.mxu0 0
        %2182 = vmatpush1.bf16.msra.mxu0 %v2147
        %2183 = vmatprep.subr.bf16.mxu0 0
        %2184 = vmatpush1.bf16.msra.mxu0 %v2146
        %2185 = vmatprep.subr.bf16.mxu0 0
        %2186 = vmatpush2.bf16.msra.mxu0 0
        %2187 = vmatprep.subr.bf16.mxu0 0
        %2188 = vmatpush2.bf16.msra.mxu0 0
        %2189 = vmatprep.subr.bf16.mxu0 0
        %2190 = vmatpush2.bf16.msra.mxu0 0
        %2191 = vmatprep.subr.bf16.mxu0 0
        %2192 = vmatpush2.bf16.msra.mxu0 0
        %2193 = vmatprep.subr.bf16.mxu0 0
        %2194 = vmatpush2.bf16.msra.mxu0 0
        %2195 = vmatprep.subr.bf16.mxu0 0
        %2196 = vmatpush2.bf16.msra.mxu0 0
        %2197 = vmatprep.subr.bf16.mxu0 0
        %2198 = vmatpush2.bf16.msra.mxu0 0
        %2199 = vmatprep.subr.bf16.mxu0 0
        %2200 = vmatpush2.bf16.msra.mxu0 0
        %2201 = vmatprep.mubr.bf16.mxu0 0
        %2202 = vmatmul.mubr.bf16.gmra.mxu0 %v2163
        %v2203 = vpop.f32.mrf.mxu0
        %v2204 = vadd.f32 %v2115, %v2203
        %v2205 = vpop.f32.mrf.mxu0
        %v2206 = vpop.f32.mrf.mxu0
        %v2207 = vpop.f32.mrf.mxu0
        %2208 = vdwg.mxu0
        %v2209 = vmax.f32 %v2204, 0.0
        %v2210 = vpack.c.bf16 %v2209, %v2209
        %v2211 = vld [vmem:[%s9] sm:$0xf]
        %v2212 = vld [vmem:[%s9 + $0x4] sm:$0xf]
        %v2213 = vld [vmem:[%s9 + $0x8] sm:$0xf]
        %v2214 = vld [vmem:[%s9 + $0xc] sm:$0xf]
        %v2215 = vld [vmem:[%s9 + $0x10] sm:$0xf]
        %v2216 = vld [vmem:[%s9 + $0x14] sm:$0xf]
        %v2217 = vld [vmem:[%s9 + $0x18] sm:$0xf]
        %v2218 = vld [vmem:[%s9 + $0x1c] sm:$0xf]
        %v2219 = vld [vmem:[%s9 + $0x20] sm:$0xf]
        %v2220 = vld [vmem:[%s9 + $0x24] sm:$0xf]
        %v2221 = vld [vmem:[%s9 + $0x28] sm:$0x3]
        %v2222 = vld [vmem:[%s10] sm:$0x1]
        %v2234 = vunpack.c.l.b16 %v2211
        %v2235 = vunpack.c.l.b16 %v2212
        %v2236 = vunpack.c.l.b16 %v2213
        %v2237 = vunpack.c.l.b16 %v2214
        %v2238 = vunpack.c.l.b16 %v2215
        %v2239 = vunpack.c.l.b16 %v2216
        %v2240 = vunpack.c.l.b16 %v2217
        %v2241 = vunpack.c.l.b16 %v2218
        %v2242 = vunpack.c.l.b16 %v2219
        %v2243 = vunpack.c.l.b16 %v2220
        %v2244 = vunpack.c.l.b16 %v2221
        %v2245 = vpack.c.b16 %v2235, %v2234
        %v2246 = vpack.c.b16 %v2237, %v2236
        %v2247 = vpack.c.b16 %v2239, %v2238
        %v2248 = vpack.c.b16 %v2241, %v2240
        %v2249 = vpack.c.b16 %v2243, %v2242
        %v2250 = vpack.c.b16 %v2244, %v2244
        %vm2256 = vcmask 687104
        %v2258 = vsel %vm2256, %v2210, 0
        %v2261 = vsel %vm1149, %v2250, 0
        %2263 = vmatprep.subr.bf16.mxu0 0
        %2264 = vmatpush1.bf16.msra.mxu0 0
        %2265 = vmatprep.subr.bf16.mxu0 0
        %2266 = vmatpush1.bf16.msra.mxu0 0
        %2267 = vmatprep.subr.bf16.mxu0 0
        %2268 = vmatpush1.bf16.msra.mxu0 %v2261
        %2269 = vmatprep.subr.bf16.mxu0 0
        %2270 = vmatpush1.bf16.msra.mxu0 %v2249
        %2271 = vmatprep.subr.bf16.mxu0 0
        %2272 = vmatpush1.bf16.msra.mxu0 %v2248
        %2273 = vmatprep.subr.bf16.mxu0 0
        %2274 = vmatpush1.bf16.msra.mxu0 %v2247
        %2275 = vmatprep.subr.bf16.mxu0 0
        %2276 = vmatpush1.bf16.msra.mxu0 %v2246
        %2277 = vmatprep.subr.bf16.mxu0 0
        %2278 = vmatpush1.bf16.msra.mxu0 %v2245
        %2279 = vmatprep.subr.bf16.mxu0 0
        %2280 = vmatpush2.bf16.msra.mxu0 0
        %2281 = vmatprep.subr.bf16.mxu0 0
        %2282 = vmatpush2.bf16.msra.mxu0 0
        %2283 = vmatprep.subr.bf16.mxu0 0
        %2284 = vmatpush2.bf16.msra.mxu0 0
        %2285 = vmatprep.subr.bf16.mxu0 0
        %2286 = vmatpush2.bf16.msra.mxu0 0
        %2287 = vmatprep.subr.bf16.mxu0 0
        %2288 = vmatpush2.bf16.msra.mxu0 0
        %2289 = vmatprep.subr.bf16.mxu0 0
        %2290 = vmatpush2.bf16.msra.mxu0 0
        %2291 = vmatprep.subr.bf16.mxu0 0
        %2292 = vmatpush2.bf16.msra.mxu0 0
        %2293 = vmatprep.subr.bf16.mxu0 0
        %2294 = vmatpush2.bf16.msra.mxu0 0
        %2295 = vmatprep.mubr.bf16.mxu0 0
        %2296 = vmatmul.mubr.bf16.gmra.mxu0 %v2258
        %v2297 = vpop.f32.mrf.mxu0
        %v2298 = vadd.f32 %v2222, %v2297
        %v2299 = vpop.f32.mrf.mxu0
        %v2300 = vpop.f32.mrf.mxu0
        %v2301 = vpop.f32.mrf.mxu0
        %2302 = vdwg.mxu0
        %2303 = vst [vmem:[%s378] sm:$0x1] %v2298
        %s2304 = sand.u32 %s269, 1
        %s2305 = scalar_lea.sflag [#allocation6], %s2304
        %s2306 = sand.u32 %s269, 1
        %s2307 = scalar_lea.vmem [#allocation5], %s2306
        // Predicated region
        $region65: #{net_forward.1} parent=63 // pred_check
          %p2308 = pneg %p279
        $region66: #{net_forward.1} parent=63 // pred_check_branch
          %2310 = sbr.rel (%p2308) target = $region68
        $region67: #{net_forward.1} parent=63 // pred_region
          %s2312 = ssub.s32 16, 16
          %2313 = vsyncadd %s2305, %s2312
          %s2314 = smul.addr %s25, 16
          %s2315 = scalar_lea.hbm %s11, %s2314
          %s2317 = sshll.u32 %s2307, 4
          %s2318 = int_to_ptr.vmem [resolvable:$true] %s2317
          %2320 = dma.vmem_to_hbm [thread:$0]  %s2318, 16, %s2315, %s2305
        $region68: #{net_forward.1} parent=63 // pred_fallthru
          _
      $region64: #{net_forward.1} parent=5 // pred_fallthru
        _
      %p2321 = scmp.le.s32.totalorder 2, %s20
      // Predicated region
      $region69: #{net_forward.1} parent=5 // pred_check
        %p2322 = pneg %p2321
      $region70: #{net_forward.1} parent=5 // pred_check_branch
        %2324 = sbr.rel (%p2322) target = $region72
      $region71: #{net_forward.1} parent=5 // pred_region
        %s2325 = ssub.s32 %s20, 2
        // Predicated region
        $region73: #{net_forward.1} parent=71 // pred_check
          %p2326 = pneg %p285
        $region74: #{net_forward.1} parent=71 // pred_check_branch
          %2328 = sbr.rel (%p2326) target = $region76
        $region75: #{net_forward.1} parent=71 // pred_region
          %s2329 = sand.u32 %s270, 1
          %s2330 = scalar_lea.sflag [#allocation6], %s2329
          %s2331 = sand.u32 %s270, 1
          %s2332 = scalar_lea.vmem [#allocation5], %s2331
          %2333 = dma.done %s2330, 16
        $region76: #{net_forward.1} parent=71 // pred_fallthru
          _
      $region72: #{net_forward.1} parent=5 // pred_fallthru
        _
    $region6: #{net_forward.1} parent=1 // loop_footer
      %s24 = sadd.s32 1, %s20
    $region7: #{net_forward.1} parent=1 // loop_footer_branch
      %19 = sbr.rel target = $region3
    $region8: #{net_forward.1} parent=1 // loop_exit
      _
    %2334 = vsyncpa [#allocation6], 1
    %s2335 = scalar_lea.sflag [#allocation6], 1
    %2336 = vsyncpa %s2335, 1

</llo_original>
